<compile_context>
chip_gen: v7x
topology: tpu7x:2x2x1
jax: 0.10.0
libtpu: 0.0.40
codegen_flags: <defaults>
</compile_context>

<pallas_src>
import functools

import jax
import jax.numpy as jnp
import numpy as np
from jax import lax
from jax.experimental import pallas as pl
from jax.experimental.pallas import tpu as pltpu


# ------------------------------ fused kernel --------------------------------

def _fused_linear_attention_kernel(x_ref, wqkv_ref, wout_ref, bout_ref, o_ref,
                                   qkv_sc, attn_sc, *, heads, dim_head):
    # x_ref:    (1, C, N)        wqkv_ref: (3*HD, C)
    # wout_ref: (C, HD)          bout_ref: (C, 1)
    # o_ref:    (1, C, N)
    # qkv_sc:   VMEM (3*HD, N)   attn_sc:  VMEM (HD, N)
    HD = heads * dim_head
    x = x_ref[0]                                                     # (C, N)

    # --- to_qkv: 1x1 conv (no bias) == channel matmul, result kept in VMEM ---
    qkv_sc[...] = jnp.dot(wqkv_ref[...], x,
                          preferred_element_type=jnp.float32)        # (3HD, N)

    # --- per-head linear attention (heads is small & static -> unrolled) ----
    for h in range(heads):
        q = qkv_sc[pl.ds(0 * HD + h * dim_head, dim_head), :]        # (D, N)
        k = qkv_sc[pl.ds(1 * HD + h * dim_head, dim_head), :]        # (D, N)
        v = qkv_sc[pl.ds(2 * HD + h * dim_head, dim_head), :]        # (D, N)

        # stable softmax over N; denominator folded into a (D,1) row scale
        k_max = jnp.max(k, axis=-1, keepdims=True)                   # (D, 1)
        k_exp = jnp.exp(k - k_max)                                   # (D, N)
        k_sum = jnp.sum(k_exp, axis=-1, keepdims=True)               # (D, 1)
        # exact reciprocal: approx=True (~2^-12 rel err) would exceed the
        # 1e-4 validation tolerance; the divide is only (D,1) anyway.
        inv_sum = pl.reciprocal(k_sum, approx=False)                 # (D, 1)

        # context[d, e] = sum_n softmax(k)[d, n] * v[e, n]   ('bhdn,bhen->bhde')
        # contract the N axes directly -- no materialized v.T
        context = lax.dot_general(k_exp, v, (((1,), (1,)), ((), ())),
                                  preferred_element_type=jnp.float32)  # (D, D)
        context = context * inv_sum                                    # row scale

        # out[e, n] = sum_d context[d, e] * q[d, n]          ('bhde,bhdn->bhen')
        out_h = lax.dot_general(context, q, (((0,), (0,)), ((), ())),
                                preferred_element_type=jnp.float32)    # (D, N)
        attn_sc[pl.ds(h * dim_head, dim_head), :] = out_h

    # --- to_out: 1x1 conv with bias; lane-dense (C, N) store -----------------
    o_ref[0] = (jnp.dot(wout_ref[...], attn_sc[...],
                        preferred_element_type=jnp.float32)
                + bout_ref[...])


# -------------------------------- wrapper ------------------------------------

def linear_attention(x, w_qkv, w_out, b_out, heads, dim_head):
    """x: (B, C, H, W) NCHW float32.  Returns (B, C, H, W).

    w_qkv: (3*heads*dim_head, C)   -- torch to_qkv.weight[..., 0, 0]
    w_out: (C, heads*dim_head)     -- torch to_out.weight[..., 0, 0]
    b_out: (C,)                    -- torch to_out.bias
    """
    B, C, H, W = x.shape
    N = H * W
    HD = heads * dim_head

    # NCHW -> (B, C, N): pure reshape, channels stay on sublanes, N on lanes.
    x_cn = x.reshape(B, C, N).astype(jnp.float32)

    kernel = functools.partial(_fused_linear_attention_kernel,
                               heads=heads, dim_head=dim_head)

    y_cn = pl.pallas_call(
        kernel,
        out_shape=jax.ShapeDtypeStruct((B, C, N), jnp.float32),
        grid=(B,),
        in_specs=[
            pl.BlockSpec((1, C, N), lambda b: (b, 0, 0)),      # x (per batch)
            pl.BlockSpec((3 * HD, C), lambda b: (0, 0)),       # w_qkv (resident)
            pl.BlockSpec((C, HD), lambda b: (0, 0)),           # w_out (resident)
            pl.BlockSpec((C, 1), lambda b: (0, 0)),            # bias  (resident)
        ],
        out_specs=pl.BlockSpec((1, C, N), lambda b: (b, 0, 0)),
        scratch_shapes=[
            pltpu.VMEM((3 * HD, N), jnp.float32),              # qkv intermediate
            pltpu.VMEM((HD, N), jnp.float32),                  # attention output
        ],
        compiler_params=pltpu.CompilerParams(
            dimension_semantics=("parallel",)),
    )(x_cn, w_qkv, w_out, b_out.reshape(C, 1))

    # (B, C, N) -> NCHW: pure reshape.
    return y_cn.reshape(B, C, H, W)


# --------------------------- pure-JAX reference ------------------------------

def linear_attention_ref(x, w_qkv, w_out, b_out, heads, dim_head):
    B, C, H, W = x.shape
    N = H * W
    HD = heads * dim_head
    x_flat = x.reshape(B, C, N)
    qkv = jnp.einsum('oc,bcn->bon', w_qkv, x_flat)               # (B, 3HD, N)
    qkv = qkv.reshape(B, 3, heads, dim_head, N)
    q, k, v = qkv[:, 0], qkv[:, 1], qkv[:, 2]
    k = jax.nn.softmax(k, axis=-1)
    context = jnp.einsum('bhdn,bhen->bhde', k, v)
    out = jnp.einsum('bhde,bhdn->bhen', context, q)
    out = out.reshape(B, HD, N)
    y = jnp.einsum('oc,bcn->bon', w_out, out) + b_out.reshape(1, C, 1)
    return y.reshape(B, C, H, W)


# ---------------------------------- main -------------------------------------

if __name__ == "__main__":
    B, dim, H, W = 2, 4, 16, 16
    heads, dim_head = 4, 32
    HD = heads * dim_head

    key = jax.random.PRNGKey(0)
    kx, kq, ko, kb = jax.random.split(key, 4)

    x = jax.random.normal(kx, (B, dim, H, W), dtype=jnp.float32)
    # to_qkv.weight: torch Conv2d (3*HD, dim, 1, 1) -> stored as (3*HD, dim).
    w_qkv = jax.random.normal(kq, (3 * HD, dim), dtype=jnp.float32) / np.sqrt(dim)
    # to_out.weight: (dim, HD, 1, 1) -> stored as (dim, HD); bias: (dim,)
    w_out = jax.random.normal(ko, (dim, HD), dtype=jnp.float32) / np.sqrt(HD)
    b_out = jax.random.normal(kb, (dim,), dtype=jnp.float32) * 0.1

    y = linear_attention(x, w_qkv, w_out, b_out, heads, dim_head)
    y = jax.block_until_ready(y)

    y_ref = linear_attention_ref(x, w_qkv, w_out, b_out, heads, dim_head)
    y_ref = jax.block_until_ready(y_ref)

    np.testing.assert_allclose(np.asarray(y), np.asarray(y_ref),
                               rtol=1e-4, atol=1e-4)
    print("KERNEL_OK")
</pallas_src>

<mosaic_0001>
module attributes {stable_mosaic.version = 11 : i64} {
  func.func @_fused_linear_attention_kernel(%arg0: i32, %arg1: memref<1x4x256xf32, #tpu.memory_space<vmem>>, %arg2: memref<384x4xf32, #tpu.memory_space<vmem>>, %arg3: memref<4x128xf32, #tpu.memory_space<vmem>>, %arg4: memref<4x1xf32, #tpu.memory_space<vmem>>, %arg5: memref<1x4x256xf32, #tpu.memory_space<vmem>>, %arg6: memref<384x256xf32, #tpu.memory_space<vmem>>, %arg7: memref<128x256xf32, #tpu.memory_space<vmem>>) attributes {dimension_semantics = [#tpu.dimension_semantics<parallel>], iteration_bounds = array<i64: 2>, scalar_prefetch = 0 : i64, scratch_operands = 2 : i64, tpu.core_type = #tpu.core_type<tc>, window_params = [{transform_indices = @transform_0, window_bounds = array<i64: 1, 4, 256>}, {pipeline_mode = #tpu.pipeline_mode<synchronous>, transform_indices = @transform_1, window_bounds = array<i64: 384, 4>}, {pipeline_mode = #tpu.pipeline_mode<synchronous>, transform_indices = @transform_2, window_bounds = array<i64: 4, 128>}, {pipeline_mode = #tpu.pipeline_mode<synchronous>, transform_indices = @transform_3, window_bounds = array<i64: 4, 1>}, {transform_indices = @transform_4, window_bounds = array<i64: 1, 4, 256>}]} {
    %c0 = arith.constant 0 : index
    %c0_0 = arith.constant 0 : index
    %c0_1 = arith.constant 0 : index
    %0 = vector.load %arg1[%c0, %c0_0, %c0_1] : memref<1x4x256xf32, #tpu.memory_space<vmem>>, vector<1x4x256xf32>
    %1 = vector.shape_cast %0 : vector<1x4x256xf32> to vector<4x256xf32>
    %c0_2 = arith.constant 0 : index
    %c0_3 = arith.constant 0 : index
    %2 = vector.load %arg2[%c0_2, %c0_3] : memref<384x4xf32, #tpu.memory_space<vmem>>, vector<384x4xf32>
    %cst = arith.constant dense<0.000000e+00> : vector<384x256xf32>
    %3 = tpu.matmul %2, %1, %cst {dimension_numbers = #tpu.dot_dimension_numbers<[1], [0], [0], [1], [0, 0, 1, 1], [], []>} : vector<384x4xf32>, vector<4x256xf32>, vector<384x256xf32> -> vector<384x256xf32>
    %c0_4 = arith.constant 0 : index
    %c0_5 = arith.constant 0 : index
    %4 = vector.load %arg6[%c0_4, %c0_5] : memref<384x256xf32, #tpu.memory_space<vmem>>, vector<384x256xf32>
    tpu.vector_store %arg6[%c0_4, %c0_5], %3 {strides = array<i32>} : memref<384x256xf32, #tpu.memory_space<vmem>>, vector<384x256xf32>,
    %c0_6 = arith.constant 0 : index
    %c0_7 = arith.constant 0 : index
    %5 = vector.load %arg6[%c0_6, %c0_7] : memref<384x256xf32, #tpu.memory_space<vmem>>, vector<32x256xf32>
    %c128 = arith.constant 128 : index
    %c0_8 = arith.constant 0 : index
    %6 = vector.load %arg6[%c128, %c0_8] : memref<384x256xf32, #tpu.memory_space<vmem>>, vector<32x256xf32>
    %c256 = arith.constant 256 : index
    %c0_9 = arith.constant 0 : index
    %7 = vector.load %arg6[%c256, %c0_9] : memref<384x256xf32, #tpu.memory_space<vmem>>, vector<32x256xf32>
    %cst_10 = arith.constant dense<0xFF800000> : vector<32xf32>
    %8 = vector.multi_reduction <maximumf>, %6, %cst_10 [1] : vector<32x256xf32> to vector<32xf32>
    %9 = vector.shape_cast %8 : vector<32xf32> to vector<32x1xf32>
    %10 = vector.broadcast %9 : vector<32x1xf32> to vector<32x256xf32>
    %11 = arith.subf %6, %10 : vector<32x256xf32>
    %12 = math.exp %11 : vector<32x256xf32>
    %cst_11 = arith.constant dense<0.000000e+00> : vector<32xf32>
    %13 = vector.multi_reduction <add>, %12, %cst_11 [1] : vector<32x256xf32> to vector<32xf32>
    %14 = vector.shape_cast %13 : vector<32xf32> to vector<32x1xf32>
    %15 = tpu.reciprocal %14 : vector<32x1xf32> -> vector<32x1xf32>
    %cst_12 = arith.constant dense<0.000000e+00> : vector<32x32xf32>
    %16 = tpu.matmul %12, %7, %cst_12 {dimension_numbers = #tpu.dot_dimension_numbers<[1], [1], [0], [0], [0, 0, 1, 0], [], []>} : vector<32x256xf32>, vector<32x256xf32>, vector<32x32xf32> -> vector<32x32xf32>
    %17 = vector.broadcast %15 : vector<32x1xf32> to vector<32x32xf32>
    %18 = arith.mulf %16, %17 : vector<32x32xf32>
    %cst_13 = arith.constant dense<0.000000e+00> : vector<32x256xf32>
    %19 = tpu.matmul %18, %5, %cst_13 {dimension_numbers = #tpu.dot_dimension_numbers<[0], [0], [1], [1], [0, 1, 1, 1], [], []>} : vector<32x32xf32>, vector<32x256xf32>, vector<32x256xf32> -> vector<32x256xf32>
    %c0_14 = arith.constant 0 : index
    %c0_15 = arith.constant 0 : index
    %20 = vector.load %arg7[%c0_14, %c0_15] : memref<128x256xf32, #tpu.memory_space<vmem>>, vector<32x256xf32>
    tpu.vector_store %arg7[%c0_14, %c0_15], %19 {strides = array<i32>} : memref<128x256xf32, #tpu.memory_space<vmem>>, vector<32x256xf32>,
    %c32 = arith.constant 32 : index
    %c0_16 = arith.constant 0 : index
    %21 = vector.load %arg6[%c32, %c0_16] : memref<384x256xf32, #tpu.memory_space<vmem>>, vector<32x256xf32>
    %c160 = arith.constant 160 : index
    %c0_17 = arith.constant 0 : index
    %22 = vector.load %arg6[%c160, %c0_17] : memref<384x256xf32, #tpu.memory_space<vmem>>, vector<32x256xf32>
    %c288 = arith.constant 288 : index
    %c0_18 = arith.constant 0 : index
    %23 = vector.load %arg6[%c288, %c0_18] : memref<384x256xf32, #tpu.memory_space<vmem>>, vector<32x256xf32>
    %cst_19 = arith.constant dense<0xFF800000> : vector<32xf32>
    %24 = vector.multi_reduction <maximumf>, %22, %cst_19 [1] : vector<32x256xf32> to vector<32xf32>
    %25 = vector.shape_cast %24 : vector<32xf32> to vector<32x1xf32>
    %26 = vector.broadcast %25 : vector<32x1xf32> to vector<32x256xf32>
    %27 = arith.subf %22, %26 : vector<32x256xf32>
    %28 = math.exp %27 : vector<32x256xf32>
    %cst_20 = arith.constant dense<0.000000e+00> : vector<32xf32>
    %29 = vector.multi_reduction <add>, %28, %cst_20 [1] : vector<32x256xf32> to vector<32xf32>
    %30 = vector.shape_cast %29 : vector<32xf32> to vector<32x1xf32>
    %31 = tpu.reciprocal %30 : vector<32x1xf32> -> vector<32x1xf32>
    %cst_21 = arith.constant dense<0.000000e+00> : vector<32x32xf32>
    %32 = tpu.matmul %28, %23, %cst_21 {dimension_numbers = #tpu.dot_dimension_numbers<[1], [1], [0], [0], [0, 0, 1, 0], [], []>} : vector<32x256xf32>, vector<32x256xf32>, vector<32x32xf32> -> vector<32x32xf32>
    %33 = vector.broadcast %31 : vector<32x1xf32> to vector<32x32xf32>
    %34 = arith.mulf %32, %33 : vector<32x32xf32>
    %cst_22 = arith.constant dense<0.000000e+00> : vector<32x256xf32>
    %35 = tpu.matmul %34, %21, %cst_22 {dimension_numbers = #tpu.dot_dimension_numbers<[0], [0], [1], [1], [0, 1, 1, 1], [], []>} : vector<32x32xf32>, vector<32x256xf32>, vector<32x256xf32> -> vector<32x256xf32>
    %c32_23 = arith.constant 32 : index
    %c0_24 = arith.constant 0 : index
    %36 = vector.load %arg7[%c32_23, %c0_24] : memref<128x256xf32, #tpu.memory_space<vmem>>, vector<32x256xf32>
    tpu.vector_store %arg7[%c32_23, %c0_24], %35 {strides = array<i32>} : memref<128x256xf32, #tpu.memory_space<vmem>>, vector<32x256xf32>,
    %c64 = arith.constant 64 : index
    %c0_25 = arith.constant 0 : index
    %37 = vector.load %arg6[%c64, %c0_25] : memref<384x256xf32, #tpu.memory_space<vmem>>, vector<32x256xf32>
    %c192 = arith.constant 192 : index
    %c0_26 = arith.constant 0 : index
    %38 = vector.load %arg6[%c192, %c0_26] : memref<384x256xf32, #tpu.memory_space<vmem>>, vector<32x256xf32>
    %c320 = arith.constant 320 : index
    %c0_27 = arith.constant 0 : index
    %39 = vector.load %arg6[%c320, %c0_27] : memref<384x256xf32, #tpu.memory_space<vmem>>, vector<32x256xf32>
    %cst_28 = arith.constant dense<0xFF800000> : vector<32xf32>
    %40 = vector.multi_reduction <maximumf>, %38, %cst_28 [1] : vector<32x256xf32> to vector<32xf32>
    %41 = vector.shape_cast %40 : vector<32xf32> to vector<32x1xf32>
    %42 = vector.broadcast %41 : vector<32x1xf32> to vector<32x256xf32>
    %43 = arith.subf %38, %42 : vector<32x256xf32>
    %44 = math.exp %43 : vector<32x256xf32>
    %cst_29 = arith.constant dense<0.000000e+00> : vector<32xf32>
    %45 = vector.multi_reduction <add>, %44, %cst_29 [1] : vector<32x256xf32> to vector<32xf32>
    %46 = vector.shape_cast %45 : vector<32xf32> to vector<32x1xf32>
    %47 = tpu.reciprocal %46 : vector<32x1xf32> -> vector<32x1xf32>
    %cst_30 = arith.constant dense<0.000000e+00> : vector<32x32xf32>
    %48 = tpu.matmul %44, %39, %cst_30 {dimension_numbers = #tpu.dot_dimension_numbers<[1], [1], [0], [0], [0, 0, 1, 0], [], []>} : vector<32x256xf32>, vector<32x256xf32>, vector<32x32xf32> -> vector<32x32xf32>
    %49 = vector.broadcast %47 : vector<32x1xf32> to vector<32x32xf32>
    %50 = arith.mulf %48, %49 : vector<32x32xf32>
    %cst_31 = arith.constant dense<0.000000e+00> : vector<32x256xf32>
    %51 = tpu.matmul %50, %37, %cst_31 {dimension_numbers = #tpu.dot_dimension_numbers<[0], [0], [1], [1], [0, 1, 1, 1], [], []>} : vector<32x32xf32>, vector<32x256xf32>, vector<32x256xf32> -> vector<32x256xf32>
    %c64_32 = arith.constant 64 : index
    %c0_33 = arith.constant 0 : index
    %52 = vector.load %arg7[%c64_32, %c0_33] : memref<128x256xf32, #tpu.memory_space<vmem>>, vector<32x256xf32>
    tpu.vector_store %arg7[%c64_32, %c0_33], %51 {strides = array<i32>} : memref<128x256xf32, #tpu.memory_space<vmem>>, vector<32x256xf32>,
    %c96 = arith.constant 96 : index
    %c0_34 = arith.constant 0 : index
    %53 = vector.load %arg6[%c96, %c0_34] : memref<384x256xf32, #tpu.memory_space<vmem>>, vector<32x256xf32>
    %c224 = arith.constant 224 : index
    %c0_35 = arith.constant 0 : index
    %54 = vector.load %arg6[%c224, %c0_35] : memref<384x256xf32, #tpu.memory_space<vmem>>, vector<32x256xf32>
    %c352 = arith.constant 352 : index
    %c0_36 = arith.constant 0 : index
    %55 = vector.load %arg6[%c352, %c0_36] : memref<384x256xf32, #tpu.memory_space<vmem>>, vector<32x256xf32>
    %cst_37 = arith.constant dense<0xFF800000> : vector<32xf32>
    %56 = vector.multi_reduction <maximumf>, %54, %cst_37 [1] : vector<32x256xf32> to vector<32xf32>
    %57 = vector.shape_cast %56 : vector<32xf32> to vector<32x1xf32>
    %58 = vector.broadcast %57 : vector<32x1xf32> to vector<32x256xf32>
    %59 = arith.subf %54, %58 : vector<32x256xf32>
    %60 = math.exp %59 : vector<32x256xf32>
    %cst_38 = arith.constant dense<0.000000e+00> : vector<32xf32>
    %61 = vector.multi_reduction <add>, %60, %cst_38 [1] : vector<32x256xf32> to vector<32xf32>
    %62 = vector.shape_cast %61 : vector<32xf32> to vector<32x1xf32>
    %63 = tpu.reciprocal %62 : vector<32x1xf32> -> vector<32x1xf32>
    %cst_39 = arith.constant dense<0.000000e+00> : vector<32x32xf32>
    %64 = tpu.matmul %60, %55, %cst_39 {dimension_numbers = #tpu.dot_dimension_numbers<[1], [1], [0], [0], [0, 0, 1, 0], [], []>} : vector<32x256xf32>, vector<32x256xf32>, vector<32x32xf32> -> vector<32x32xf32>
    %65 = vector.broadcast %63 : vector<32x1xf32> to vector<32x32xf32>
    %66 = arith.mulf %64, %65 : vector<32x32xf32>
    %cst_40 = arith.constant dense<0.000000e+00> : vector<32x256xf32>
    %67 = tpu.matmul %66, %53, %cst_40 {dimension_numbers = #tpu.dot_dimension_numbers<[0], [0], [1], [1], [0, 1, 1, 1], [], []>} : vector<32x32xf32>, vector<32x256xf32>, vector<32x256xf32> -> vector<32x256xf32>
    %c96_41 = arith.constant 96 : index
    %c0_42 = arith.constant 0 : index
    %68 = vector.load %arg7[%c96_41, %c0_42] : memref<128x256xf32, #tpu.memory_space<vmem>>, vector<32x256xf32>
    tpu.vector_store %arg7[%c96_41, %c0_42], %67 {strides = array<i32>} : memref<128x256xf32, #tpu.memory_space<vmem>>, vector<32x256xf32>,
    %c0_43 = arith.constant 0 : index
    %c0_44 = arith.constant 0 : index
    %69 = vector.load %arg3[%c0_43, %c0_44] : memref<4x128xf32, #tpu.memory_space<vmem>>, vector<4x128xf32>
    %c0_45 = arith.constant 0 : index
    %c0_46 = arith.constant 0 : index
    %70 = vector.load %arg7[%c0_45, %c0_46] : memref<128x256xf32, #tpu.memory_space<vmem>>, vector<128x256xf32>
    %cst_47 = arith.constant dense<0.000000e+00> : vector<4x256xf32>
    %71 = tpu.matmul %69, %70, %cst_47 {dimension_numbers = #tpu.dot_dimension_numbers<[1], [0], [0], [1], [0, 0, 1, 1], [], []>} : vector<4x128xf32>, vector<128x256xf32>, vector<4x256xf32> -> vector<4x256xf32>
    %c0_48 = arith.constant 0 : index
    %c0_49 = arith.constant 0 : index
    %72 = vector.load %arg4[%c0_48, %c0_49] : memref<4x1xf32, #tpu.memory_space<vmem>>, vector<4x1xf32>
    %73 = vector.broadcast %72 : vector<4x1xf32> to vector<4x256xf32>
    %74 = arith.addf %71, %73 : vector<4x256xf32>
    %c0_50 = arith.constant 0 : index
    %c0_51 = arith.constant 0 : index
    %c0_52 = arith.constant 0 : index
    %75 = vector.load %arg5[%c0_50, %c0_51, %c0_52] : memref<1x4x256xf32, #tpu.memory_space<vmem>>, vector<1x4x256xf32>
    %76 = vector.shape_cast %75 : vector<1x4x256xf32> to vector<4x256xf32>
    %77 = vector.shape_cast %74 : vector<4x256xf32> to vector<1x4x256xf32>
    tpu.vector_store %arg5[%c0_50, %c0_51, %c0_52], %77 {strides = array<i32>} : memref<1x4x256xf32, #tpu.memory_space<vmem>>, vector<1x4x256xf32>,
    return
  }
  func.func @transform_0(%arg0: i32) -> (i32, i32, i32) {
    %c0_i32 = arith.constant 0 : i32
    %c0_i32_0 = arith.constant 0 : i32
    %c0_i32_1 = arith.constant 0 : i32
    return %arg0, %c0_i32, %c0_i32_0 : i32, i32, i32
  }
  func.func @transform_1(%arg0: i32) -> (i32, i32) {
    %c0_i32 = arith.constant 0 : i32
    %c0_i32_0 = arith.constant 0 : i32
    %c0_i32_1 = arith.constant 0 : i32
    return %c0_i32, %c0_i32_0 : i32, i32
  }
  func.func @transform_2(%arg0: i32) -> (i32, i32) {
    %c0_i32 = arith.constant 0 : i32
    %c0_i32_0 = arith.constant 0 : i32
    %c0_i32_1 = arith.constant 0 : i32
    return %c0_i32, %c0_i32_0 : i32, i32
  }
  func.func @transform_3(%arg0: i32) -> (i32, i32) {
    %c0_i32 = arith.constant 0 : i32
    %c0_i32_0 = arith.constant 0 : i32
    %c0_i32_1 = arith.constant 0 : i32
    return %c0_i32, %c0_i32_0 : i32, i32
  }
  func.func @transform_4(%arg0: i32) -> (i32, i32, i32) {
    %c0_i32 = arith.constant 0 : i32
    %c0_i32_0 = arith.constant 0 : i32
    %c0_i32_1 = arith.constant 0 : i32
    return %arg0, %c0_i32, %c0_i32_0 : i32, i32, i32
  }
}

</mosaic_0001>

<llo_original>
// kernel: tpu_custom_call.1
$region0: #{tpu_custom_call.1}
  #allocation0 [shape = 'u32[]', space=smem, size = 0x4, offset = 0x4, fixed_abs, tag = 'smem constant byte address 0x4 - core index']
  #allocation1 [shape = 'u32[144,128]{1,0:T(1,128)}', space=vmem, size = 0x12000, scoped, tag = 'internal scratch']
  #allocation2 [shape = 'f32[384,256]{1,0:T(8,128)}', space=vmem, size = 0x60000, scoped, tag = 'scratch operand']
  #allocation3 [shape = 'f32[128,256]{1,0:T(8,128)}', space=vmem, size = 0x20000, scoped, tag = 'scratch operand']
  %s0 = inlined_call_operand.vmem [shape: f32[2,4,256], index: 0, kind: input, shape index: {}]
  %s1 = inlined_call_operand.vmem [shape: f32[384,4], index: 1, kind: input, shape index: {}]
  %s2 = inlined_call_operand.vmem [shape: f32[4,128], index: 2, kind: input, shape index: {}]
  %s3 = inlined_call_operand.vmem [shape: f32[4,1], index: 3, kind: input, shape index: {}]
  %s4 = inlined_call_operand.hbm [shape: f32[2,4,256], index: 4, kind: output, shape index: {}]
  %s5 = sld [smem:[#allocation0]]
  $region49: #{tpu_custom_call.1} parent=0
    _
  %s7 = ssub.s32 1, %s5
  %s8 = scalar_select 0, %s7, %s5
  $region1: #{tpu_custom_call.1} parent=0
    #allocation4 [shape = 'u8[8192]{0}', space=vmem, size = 0x2000, scoped, tag = 'output window, operand 0']
    #allocation5 [shape = 's32[2]{0}', space=sflag, size = 0x8, scoped, tag = 'scoped memory for tpu_custom_call.1']
    %9 = vsyncpa [#allocation5], 0
    %s10 = scalar_lea.sflag [#allocation5], 1
    %11 = vsyncpa %s10, 0
    loop: start=0, step=1, limit=4
    $region2: #{tpu_custom_call.1} parent=1 // loop_pre_header
      _
    $region3: #{tpu_custom_call.1} parent=1 // loop_header
      %s13 = sphi 0, %s17
      %p14 = scmp.ge.s32.totalorder %s13, 4
      %s23 = sphi 0, %s25
      %s26 = sphi 0, %s23
      %s27 = sphi 0, %s26
      %s43 = sphi 0, %s27
      %s47 = sphi 0, %s47
      %s49 = sphi 0, %s47
      %s50 = sphi 0, %s49
      %s64 = sphi 0, %s50
      %s68 = sphi 0, %s68
      %s70 = sphi 0, %s68
      %s71 = sphi 0, %s70
      %s85 = sphi 0, %s71
      %s89 = sphi 0, %s89
      %s91 = sphi 0, %s89
      %s92 = sphi 0, %s91
      %s106 = sphi 0, %s92
      %s112 = sphi 0, %s114
      %s115 = sphi 0, %s112
      %s116 = sphi 0, %s115
      %s132 = sphi 0, %s116
    $region4: #{tpu_custom_call.1} parent=1 // loop_header_branch
      %16 = sbr.rel (%p14) target = $region8
    $region5: #{tpu_custom_call.1} parent=1 // loop_body
      %s18 = ssub.s32 %s13, 1
      %s19 = ssub.s32 %s13, 2
      %s20 = sadd.s32 %s13, 1
      %s21 = ssub.s32 %s13, %s20
      %p22 = scmp.eq.s32.totalorder %s21, 0
      %s24 = sadd.s32 %s23, 1
      %s25 = scalar_select %p22, %s23, %s24
      %p28 = pneg %p22
      %p29 = scmp.eq.s32.totalorder %s13, 1
      %p30 = por %p28, %p29
      %p31 = scmp.ne.s32.totalorder %s23, %s26
      %p32 = scmp.eq.s32.totalorder %s13, 0
      %p33 = por %p31, %p32
      %p34 = scmp.ne.s32.totalorder %s23, %s26
      %p35 = scmp.eq.s32.totalorder %s18, 1
      %p36 = por %p34, %p35
      %p37 = scmp.ne.s32.totalorder %s26, %s27
      %p38 = scmp.eq.s32.totalorder %s18, 0
      %p39 = por %p37, %p38
      %p40 = scmp.ne.s32.totalorder %s26, %s27
      %p41 = scmp.eq.s32.totalorder %s19, 1
      %p42 = por %p40, %p41
      %p44 = scmp.ne.s32.totalorder %s27, %s43
      %p45 = scmp.eq.s32.totalorder %s19, 0
      %p46 = por %p44, %p45
      %s48 = sadd.s32 %s47, 1
      %p51 = scmp.eq.s32.totalorder %s13, 1
      %p52 = scmp.ne.s32.totalorder %s47, %s49
      %p53 = scmp.eq.s32.totalorder %s13, 0
      %p54 = por %p52, %p53
      %p55 = scmp.ne.s32.totalorder %s47, %s49
      %p56 = scmp.eq.s32.totalorder %s18, 1
      %p57 = por %p55, %p56
      %p58 = scmp.ne.s32.totalorder %s49, %s50
      %p59 = scmp.eq.s32.totalorder %s18, 0
      %p60 = por %p58, %p59
      %p61 = scmp.ne.s32.totalorder %s49, %s50
      %p62 = scmp.eq.s32.totalorder %s19, 1
      %p63 = por %p61, %p62
      %p65 = scmp.ne.s32.totalorder %s50, %s64
      %p66 = scmp.eq.s32.totalorder %s19, 0
      %p67 = por %p65, %p66
      %s69 = sadd.s32 %s68, 1
      %p72 = scmp.eq.s32.totalorder %s13, 1
      %p73 = scmp.ne.s32.totalorder %s68, %s70
      %p74 = scmp.eq.s32.totalorder %s13, 0
      %p75 = por %p73, %p74
      %p76 = scmp.ne.s32.totalorder %s68, %s70
      %p77 = scmp.eq.s32.totalorder %s18, 1
      %p78 = por %p76, %p77
      %p79 = scmp.ne.s32.totalorder %s70, %s71
      %p80 = scmp.eq.s32.totalorder %s18, 0
      %p81 = por %p79, %p80
      %p82 = scmp.ne.s32.totalorder %s70, %s71
      %p83 = scmp.eq.s32.totalorder %s19, 1
      %p84 = por %p82, %p83
      %p86 = scmp.ne.s32.totalorder %s71, %s85
      %p87 = scmp.eq.s32.totalorder %s19, 0
      %p88 = por %p86, %p87
      %s90 = sadd.s32 %s89, 1
      %p93 = scmp.eq.s32.totalorder %s13, 1
      %p94 = scmp.ne.s32.totalorder %s89, %s91
      %p95 = scmp.eq.s32.totalorder %s13, 0
      %p96 = por %p94, %p95
      %p97 = scmp.ne.s32.totalorder %s89, %s91
      %p98 = scmp.eq.s32.totalorder %s18, 1
      %p99 = por %p97, %p98
      %p100 = scmp.ne.s32.totalorder %s91, %s92
      %p101 = scmp.eq.s32.totalorder %s18, 0
      %p102 = por %p100, %p101
      %p103 = scmp.ne.s32.totalorder %s91, %s92
      %p104 = scmp.eq.s32.totalorder %s19, 1
      %p105 = por %p103, %p104
      %p107 = scmp.ne.s32.totalorder %s92, %s106
      %p108 = scmp.eq.s32.totalorder %s19, 0
      %p109 = por %p107, %p108
      %s110 = ssub.s32 %s13, %s20
      %p111 = scmp.eq.s32.totalorder %s110, 0
      %s113 = sadd.s32 %s112, 1
      %s114 = scalar_select %p111, %s112, %s113
      %p117 = pneg %p111
      %p118 = scmp.eq.s32.totalorder %s13, 1
      %p119 = por %p117, %p118
      %p120 = scmp.ne.s32.totalorder %s112, %s115
      %p121 = scmp.eq.s32.totalorder %s13, 0
      %p122 = por %p120, %p121
      %p123 = scmp.ne.s32.totalorder %s112, %s115
      %p124 = scmp.eq.s32.totalorder %s18, 1
      %p125 = por %p123, %p124
      %p126 = scmp.ne.s32.totalorder %s115, %s116
      %p127 = scmp.eq.s32.totalorder %s18, 0
      %p128 = por %p126, %p127
      %p129 = scmp.ne.s32.totalorder %s115, %s116
      %p130 = scmp.eq.s32.totalorder %s19, 1
      %p131 = por %p129, %p130
      %p133 = scmp.ne.s32.totalorder %s116, %s132
      %p134 = scmp.eq.s32.totalorder %s19, 0
      %p135 = por %p133, %p134
      %p136 = scmp.le.s32.totalorder 1, %s13
      %p137 = scmp.lt.s32.totalorder %s13, 3
      %p138 = pnand %p136, %p137
      %p139 = pneg %p138
      // Predicated region
      $region9: #{tpu_custom_call.1} parent=5 // pred_check
        _
      $region10: #{tpu_custom_call.1} parent=5 // pred_check_branch
        %141 = sbr.rel (%p138) target = $region12
      $region11: #{tpu_custom_call.1} parent=5 // pred_region
        %s142 = ssub.s32 %s13, 1
        // Predicated region
        $region13: #{tpu_custom_call.1} parent=11 // pred_check
          %p143 = pneg %p60
        $region14: #{tpu_custom_call.1} parent=11 // pred_check_branch
          %145 = sbr.rel (%p143) target = $region16
        $region15: #{tpu_custom_call.1} parent=11 // pred_region
          _
        $region16: #{tpu_custom_call.1} parent=11 // pred_fallthru
          _
        // Predicated region
        $region17: #{tpu_custom_call.1} parent=11 // pred_check
          %p146 = pneg %p81
        $region18: #{tpu_custom_call.1} parent=11 // pred_check_branch
          %148 = sbr.rel (%p146) target = $region20
        $region19: #{tpu_custom_call.1} parent=11 // pred_region
          _
        $region20: #{tpu_custom_call.1} parent=11 // pred_fallthru
          _
        // Predicated region
        $region21: #{tpu_custom_call.1} parent=11 // pred_check
          %p149 = pneg %p102
        $region22: #{tpu_custom_call.1} parent=11 // pred_check_branch
          %151 = sbr.rel (%p149) target = $region24
        $region23: #{tpu_custom_call.1} parent=11 // pred_region
          _
        $region24: #{tpu_custom_call.1} parent=11 // pred_fallthru
          _
      $region12: #{tpu_custom_call.1} parent=5 // pred_fallthru
        _
      %p152 = scmp.lt.s32.totalorder %s13, 2
      // Predicated region
      $region25: #{tpu_custom_call.1} parent=5 // pred_check
        %p153 = pneg %p152
      $region26: #{tpu_custom_call.1} parent=5 // pred_check_branch
        %155 = sbr.rel (%p153) target = $region28
      $region27: #{tpu_custom_call.1} parent=5 // pred_region
        // Predicated region
        $region29: #{tpu_custom_call.1} parent=27 // pred_check
          %p156 = pneg %p33
        $region30: #{tpu_custom_call.1} parent=27 // pred_check_branch
          %158 = sbr.rel (%p156) target = $region32
        $region31: #{tpu_custom_call.1} parent=27 // pred_region
          %p159 = scmp.lt.s32.totalorder %s13, 1
          %s160 = scalar_select %p159, %s13, 1
          %s161 = smul.addr %s160, 2
          %s162 = smul.addr %s161, 4
          %s163 = scalar_lea.vmem %s0, %s162
        $region32: #{tpu_custom_call.1} parent=27 // pred_fallthru
          _
      $region28: #{tpu_custom_call.1} parent=5 // pred_fallthru
        _
      %p164 = scmp.le.s32.totalorder 1, %s13
      %p165 = scmp.lt.s32.totalorder %s13, 3
      %p166 = pnand %p164, %p165
      %p167 = pneg %p166
      // Predicated region
      $region33: #{tpu_custom_call.1} parent=5 // pred_check
        _
      $region34: #{tpu_custom_call.1} parent=5 // pred_check_branch
        %169 = sbr.rel (%p166) target = $region36
      $region35: #{tpu_custom_call.1} parent=5 // pred_region
        %s170 = ssub.s32 %s13, 1
        %p171 = scmp.lt.s32.totalorder %s18, 1
        %s172 = scalar_select %p171, %s18, 1
        %s173 = smul.addr %s172, 2
        %s174 = smul.addr %s173, 4
        %s175 = scalar_lea.vmem %s0, %s174
        %p176 = pneg %p39
        %p177 = pneg %p36
        %p178 = pneg %p60
        %p179 = pneg %p57
        %p180 = pneg %p81
        %p181 = pneg %p78
        %p182 = pneg %p102
        %p183 = pneg %p99
        %p184 = pneg %p128
        %p185 = pneg %p125
        %s186 = sand.u32 %s115, 1
        %s187 = scalar_lea.sflag [#allocation5], %s186
        %s188 = sand.u32 %s115, 1
        %s189 = smul.addr %s188, 8
        %s190 = scalar_lea.vmem [#allocation4], %s189
        %p191 = scmp.lt.s32.totalorder %s18, 1
        %s192 = scalar_select %p191, %s18, 1
        %s193 = smul.addr %s192, 2
        %s194 = smul.addr %s193, 4
        %s195 = scalar_lea.vmem %s0, %s194
        %v196 = vld [vmem:[%s195] sm:$0xff]
        %v197 = vld [vmem:[%s1] sm:$0xff]
        %v198 = vld [vmem:[%s1 + $0x8] sm:$0xff]
        %v199 = vld [vmem:[%s1 + $0x10] sm:$0xff]
        %v200 = vld [vmem:[%s1 + $0x18] sm:$0xff]
        %v201 = vld [vmem:[%s1 + $0x20] sm:$0xff]
        %v202 = vld [vmem:[%s1 + $0x28] sm:$0xff]
        %v203 = vld [vmem:[%s1 + $0x30] sm:$0xff]
        %v204 = vld [vmem:[%s1 + $0x38] sm:$0xff]
        %v205 = vld [vmem:[%s1 + $0x40] sm:$0xff]
        %v206 = vld [vmem:[%s1 + $0x48] sm:$0xff]
        %v207 = vld [vmem:[%s1 + $0x50] sm:$0xff]
        %v208 = vld [vmem:[%s1 + $0x58] sm:$0xff]
        %v209 = vld [vmem:[%s1 + $0x60] sm:$0xff]
        %v210 = vld [vmem:[%s1 + $0x68] sm:$0xff]
        %v211 = vld [vmem:[%s1 + $0x70] sm:$0xff]
        %v212 = vld [vmem:[%s1 + $0x78] sm:$0xff]
        %v213 = vld [vmem:[%s1 + $0x80] sm:$0xff]
        %v214 = vld [vmem:[%s1 + $0x88] sm:$0xff]
        %v215 = vld [vmem:[%s1 + $0x90] sm:$0xff]
        %v216 = vld [vmem:[%s1 + $0x98] sm:$0xff]
        %v217 = vld [vmem:[%s1 + $0xa0] sm:$0xff]
        %v218 = vld [vmem:[%s1 + $0xa8] sm:$0xff]
        %v219 = vld [vmem:[%s1 + $0xb0] sm:$0xff]
        %v220 = vld [vmem:[%s1 + $0xb8] sm:$0xff]
        %v221 = vld [vmem:[%s1 + $0xc0] sm:$0xff]
        %v222 = vld [vmem:[%s1 + $0xc8] sm:$0xff]
        %v223 = vld [vmem:[%s1 + $0xd0] sm:$0xff]
        %v224 = vld [vmem:[%s1 + $0xd8] sm:$0xff]
        %v225 = vld [vmem:[%s1 + $0xe0] sm:$0xff]
        %v226 = vld [vmem:[%s1 + $0xe8] sm:$0xff]
        %v227 = vld [vmem:[%s1 + $0xf0] sm:$0xff]
        %v228 = vld [vmem:[%s1 + $0xf8] sm:$0xff]
        %v229 = vld [vmem:[%s1 + $0x100] sm:$0xff]
        %v230 = vld [vmem:[%s1 + $0x108] sm:$0xff]
        %v231 = vld [vmem:[%s1 + $0x110] sm:$0xff]
        %v232 = vld [vmem:[%s1 + $0x118] sm:$0xff]
        %v233 = vld [vmem:[%s1 + $0x120] sm:$0xff]
        %v234 = vld [vmem:[%s1 + $0x128] sm:$0xff]
        %v235 = vld [vmem:[%s1 + $0x130] sm:$0xff]
        %v236 = vld [vmem:[%s1 + $0x138] sm:$0xff]
        %v237 = vld [vmem:[%s1 + $0x140] sm:$0xff]
        %v238 = vld [vmem:[%s1 + $0x148] sm:$0xff]
        %v239 = vld [vmem:[%s1 + $0x150] sm:$0xff]
        %v240 = vld [vmem:[%s1 + $0x158] sm:$0xff]
        %v241 = vld [vmem:[%s1 + $0x160] sm:$0xff]
        %v242 = vld [vmem:[%s1 + $0x168] sm:$0xff]
        %v243 = vld [vmem:[%s1 + $0x170] sm:$0xff]
        %v244 = vld [vmem:[%s1 + $0x178] sm:$0xff]
        %v246 = vcombine.high %v196, %v196
        %vm247 = vcmask 31744
        %v249 = vsel %vm247, %v197, 0
        %v252 = vsel %vm247, %v198, 0
        %v255 = vsel %vm247, %v199, 0
        %v258 = vsel %vm247, %v200, 0
        %v261 = vsel %vm247, %v201, 0
        %v264 = vsel %vm247, %v202, 0
        %v267 = vsel %vm247, %v203, 0
        %v270 = vsel %vm247, %v204, 0
        %v273 = vsel %vm247, %v205, 0
        %v276 = vsel %vm247, %v206, 0
        %v279 = vsel %vm247, %v207, 0
        %v282 = vsel %vm247, %v208, 0
        %v285 = vsel %vm247, %v209, 0
        %v288 = vsel %vm247, %v210, 0
        %v291 = vsel %vm247, %v211, 0
        %v294 = vsel %vm247, %v212, 0
        %v297 = vsel %vm247, %v213, 0
        %v300 = vsel %vm247, %v214, 0
        %v303 = vsel %vm247, %v215, 0
        %v306 = vsel %vm247, %v216, 0
        %v309 = vsel %vm247, %v217, 0
        %v312 = vsel %vm247, %v218, 0
        %v315 = vsel %vm247, %v219, 0
        %v318 = vsel %vm247, %v220, 0
        %v321 = vsel %vm247, %v221, 0
        %v324 = vsel %vm247, %v222, 0
        %v327 = vsel %vm247, %v223, 0
        %v330 = vsel %vm247, %v224, 0
        %v333 = vsel %vm247, %v225, 0
        %v336 = vsel %vm247, %v226, 0
        %v339 = vsel %vm247, %v227, 0
        %v342 = vsel %vm247, %v228, 0
        %v345 = vsel %vm247, %v229, 0
        %v348 = vsel %vm247, %v230, 0
        %v351 = vsel %vm247, %v231, 0
        %v354 = vsel %vm247, %v232, 0
        %v357 = vsel %vm247, %v233, 0
        %v360 = vsel %vm247, %v234, 0
        %v363 = vsel %vm247, %v235, 0
        %v366 = vsel %vm247, %v236, 0
        %v369 = vsel %vm247, %v237, 0
        %v372 = vsel %vm247, %v238, 0
        %v375 = vsel %vm247, %v239, 0
        %v378 = vsel %vm247, %v240, 0
        %v381 = vsel %vm247, %v241, 0
        %v384 = vsel %vm247, %v242, 0
        %v387 = vsel %vm247, %v243, 0
        %v390 = vsel %vm247, %v244, 0
        %vm392 = vcmask 1043456
        %v393 = vsel %vm392, %v196, 0
        %v395 = vsel %vm392, %v246, 0
        %397 = vmatprep.subr.mxu0 %v395
        %398 = vmatpush1.msra.mxu0 %v393
        %399 = vmatprep.subr.mxu0 0.0
        %400 = vmatpush1.msra.mxu0 0.0
        %401 = vmatprep.subr.mxu0 0.0
        %402 = vmatpush1.msra.mxu0 0.0
        %403 = vmatprep.subr.mxu0 0.0
        %404 = vmatpush1.msra.mxu0 0.0
        %405 = vmatprep.subr.mxu0 0.0
        %406 = vmatpush1.msra.mxu0 0.0
        %407 = vmatprep.subr.mxu0 0.0
        %408 = vmatpush1.msra.mxu0 0.0
        %409 = vmatprep.subr.mxu0 0.0
        %410 = vmatpush1.msra.mxu0 0.0
        %411 = vmatprep.subr.mxu0 0.0
        %412 = vmatpush1.msra.mxu0 0.0
        %413 = vmatprep.subr.mxu0 0.0
        %414 = vmatpush1.msra.mxu0 0.0
        %415 = vmatprep.subr.mxu0 0.0
        %416 = vmatpush1.msra.mxu0 0.0
        %417 = vmatprep.subr.mxu0 0.0
        %418 = vmatpush1.msra.mxu0 0.0
        %419 = vmatprep.subr.mxu0 0.0
        %420 = vmatpush1.msra.mxu0 0.0
        %421 = vmatprep.subr.mxu0 0.0
        %422 = vmatpush1.msra.mxu0 0.0
        %423 = vmatprep.subr.mxu0 0.0
        %424 = vmatpush1.msra.mxu0 0.0
        %425 = vmatprep.subr.mxu0 0.0
        %426 = vmatpush1.msra.mxu0 0.0
        %427 = vmatprep.subr.mxu0 0.0
        %428 = vmatpush1.msra.mxu0 0.0
        %429 = vmatprep.subr.mxu0 0.0
        %430 = vmatpush1.msra.mxu0 0.0
        %431 = vmatprep.subr.mxu0 0.0
        %432 = vmatpush1.msra.mxu0 0.0
        %433 = vmatprep.subr.mxu0 0.0
        %434 = vmatpush1.msra.mxu0 0.0
        %435 = vmatprep.subr.mxu0 0.0
        %436 = vmatpush1.msra.mxu0 0.0
        %437 = vmatprep.subr.mxu0 0.0
        %438 = vmatpush1.msra.mxu0 0.0
        %439 = vmatprep.subr.mxu0 0.0
        %440 = vmatpush1.msra.mxu0 0.0
        %441 = vmatprep.subr.mxu0 0.0
        %442 = vmatpush1.msra.mxu0 0.0
        %443 = vmatprep.subr.mxu0 0.0
        %444 = vmatpush1.msra.mxu0 0.0
        %445 = vmatprep.subr.mxu0 0.0
        %446 = vmatpush1.msra.mxu0 0.0
        %447 = vmatprep.subr.mxu0 0.0
        %448 = vmatpush1.msra.mxu0 0.0
        %449 = vmatprep.subr.mxu0 0.0
        %450 = vmatpush1.msra.mxu0 0.0
        %451 = vmatprep.subr.mxu0 0.0
        %452 = vmatpush1.msra.mxu0 0.0
        %453 = vmatprep.subr.mxu0 0.0
        %454 = vmatpush1.msra.mxu0 0.0
        %455 = vmatprep.subr.mxu0 0.0
        %456 = vmatpush1.msra.mxu0 0.0
        %457 = vmatprep.subr.mxu0 0.0
        %458 = vmatpush1.msra.mxu0 0.0
        %459 = vmatprep.subr.mxu0 0.0
        %460 = vmatpush1.msra.mxu0 0.0
        %461 = vmatprep.mubr.f32.mxu0 0.0
        %462 = vmatmul.mubr.f32.gmra.mrb[0].mxu0 %v249
        %v463 = vpop.f32.mrb[0].mxu0
        %v464 = vadd.f32 0.0, %v463
        %v465 = vpop.f32.mrb[0].mxu0
        %v466 = vadd.f32 0.0, %v465
        %467 = vmatprep.mubr.f32.mxu0 0.0
        %468 = vmatmul.mubr.f32.gmra.mrb[0].mxu0 %v252
        %v469 = vpop.f32.mrb[0].mxu0
        %v470 = vadd.f32 0.0, %v469
        %v471 = vpop.f32.mrb[0].mxu0
        %v472 = vadd.f32 0.0, %v471
        %473 = vmatprep.mubr.f32.mxu0 0.0
        %474 = vmatmul.mubr.f32.gmra.mrb[0].mxu0 %v255
        %v475 = vpop.f32.mrb[0].mxu0
        %v476 = vadd.f32 0.0, %v475
        %v477 = vpop.f32.mrb[0].mxu0
        %v478 = vadd.f32 0.0, %v477
        %479 = vmatprep.mubr.f32.mxu0 0.0
        %480 = vmatmul.mubr.f32.gmra.mrb[0].mxu0 %v258
        %v481 = vpop.f32.mrb[0].mxu0
        %v482 = vadd.f32 0.0, %v481
        %v483 = vpop.f32.mrb[0].mxu0
        %v484 = vadd.f32 0.0, %v483
        %485 = vmatprep.mubr.f32.mxu0 0.0
        %486 = vmatmul.mubr.f32.gmra.mrb[0].mxu0 %v261
        %v487 = vpop.f32.mrb[0].mxu0
        %v488 = vadd.f32 0.0, %v487
        %v489 = vpop.f32.mrb[0].mxu0
        %v490 = vadd.f32 0.0, %v489
        %491 = vmatprep.mubr.f32.mxu0 0.0
        %492 = vmatmul.mubr.f32.gmra.mrb[0].mxu0 %v264
        %v493 = vpop.f32.mrb[0].mxu0
        %v494 = vadd.f32 0.0, %v493
        %v495 = vpop.f32.mrb[0].mxu0
        %v496 = vadd.f32 0.0, %v495
        %497 = vmatprep.mubr.f32.mxu0 0.0
        %498 = vmatmul.mubr.f32.gmra.mrb[0].mxu0 %v267
        %v499 = vpop.f32.mrb[0].mxu0
        %v500 = vadd.f32 0.0, %v499
        %v501 = vpop.f32.mrb[0].mxu0
        %v502 = vadd.f32 0.0, %v501
        %503 = vmatprep.mubr.f32.mxu0 0.0
        %504 = vmatmul.mubr.f32.gmra.mrb[0].mxu0 %v270
        %v505 = vpop.f32.mrb[0].mxu0
        %v506 = vadd.f32 0.0, %v505
        %v507 = vpop.f32.mrb[0].mxu0
        %v508 = vadd.f32 0.0, %v507
        %509 = vmatprep.mubr.f32.mxu0 0.0
        %510 = vmatmul.mubr.f32.gmra.mrb[0].mxu0 %v273
        %v511 = vpop.f32.mrb[0].mxu0
        %v512 = vadd.f32 0.0, %v511
        %v513 = vpop.f32.mrb[0].mxu0
        %v514 = vadd.f32 0.0, %v513
        %515 = vmatprep.mubr.f32.mxu0 0.0
        %516 = vmatmul.mubr.f32.gmra.mrb[0].mxu0 %v276
        %v517 = vpop.f32.mrb[0].mxu0
        %v518 = vadd.f32 0.0, %v517
        %v519 = vpop.f32.mrb[0].mxu0
        %v520 = vadd.f32 0.0, %v519
        %521 = vmatprep.mubr.f32.mxu0 0.0
        %522 = vmatmul.mubr.f32.gmra.mrb[0].mxu0 %v279
        %v523 = vpop.f32.mrb[0].mxu0
        %v524 = vadd.f32 0.0, %v523
        %v525 = vpop.f32.mrb[0].mxu0
        %v526 = vadd.f32 0.0, %v525
        %527 = vmatprep.mubr.f32.mxu0 0.0
        %528 = vmatmul.mubr.f32.gmra.mrb[0].mxu0 %v282
        %v529 = vpop.f32.mrb[0].mxu0
        %v530 = vadd.f32 0.0, %v529
        %v531 = vpop.f32.mrb[0].mxu0
        %v532 = vadd.f32 0.0, %v531
        %533 = vmatprep.mubr.f32.mxu0 0.0
        %534 = vmatmul.mubr.f32.gmra.mrb[0].mxu0 %v285
        %v535 = vpop.f32.mrb[0].mxu0
        %v536 = vadd.f32 0.0, %v535
        %v537 = vpop.f32.mrb[0].mxu0
        %v538 = vadd.f32 0.0, %v537
        %539 = vmatprep.mubr.f32.mxu0 0.0
        %540 = vmatmul.mubr.f32.gmra.mrb[0].mxu0 %v288
        %v541 = vpop.f32.mrb[0].mxu0
        %v542 = vadd.f32 0.0, %v541
        %v543 = vpop.f32.mrb[0].mxu0
        %v544 = vadd.f32 0.0, %v543
        %545 = vmatprep.mubr.f32.mxu0 0.0
        %546 = vmatmul.mubr.f32.gmra.mrb[0].mxu0 %v291
        %v547 = vpop.f32.mrb[0].mxu0
        %v548 = vadd.f32 0.0, %v547
        %v549 = vpop.f32.mrb[0].mxu0
        %v550 = vadd.f32 0.0, %v549
        %551 = vmatprep.mubr.f32.mxu0 0.0
        %552 = vmatmul.mubr.f32.gmra.mrb[0].mxu0 %v294
        %v553 = vpop.f32.mrb[0].mxu0
        %v554 = vadd.f32 0.0, %v553
        %v555 = vpop.f32.mrb[0].mxu0
        %v556 = vadd.f32 0.0, %v555
        %557 = vmatprep.mubr.f32.mxu0 0.0
        %558 = vmatmul.mubr.f32.gmra.mrb[0].mxu0 %v297
        %v559 = vpop.f32.mrb[0].mxu0
        %v560 = vadd.f32 0.0, %v559
        %v561 = vpop.f32.mrb[0].mxu0
        %v562 = vadd.f32 0.0, %v561
        %563 = vmatprep.mubr.f32.mxu0 0.0
        %564 = vmatmul.mubr.f32.gmra.mrb[0].mxu0 %v300
        %v565 = vpop.f32.mrb[0].mxu0
        %v566 = vadd.f32 0.0, %v565
        %v567 = vpop.f32.mrb[0].mxu0
        %v568 = vadd.f32 0.0, %v567
        %569 = vmatprep.mubr.f32.mxu0 0.0
        %570 = vmatmul.mubr.f32.gmra.mrb[0].mxu0 %v303
        %v571 = vpop.f32.mrb[0].mxu0
        %v572 = vadd.f32 0.0, %v571
        %v573 = vpop.f32.mrb[0].mxu0
        %v574 = vadd.f32 0.0, %v573
        %575 = vmatprep.mubr.f32.mxu0 0.0
        %576 = vmatmul.mubr.f32.gmra.mrb[0].mxu0 %v306
        %v577 = vpop.f32.mrb[0].mxu0
        %v578 = vadd.f32 0.0, %v577
        %v579 = vpop.f32.mrb[0].mxu0
        %v580 = vadd.f32 0.0, %v579
        %581 = vmatprep.mubr.f32.mxu0 0.0
        %582 = vmatmul.mubr.f32.gmra.mrb[0].mxu0 %v309
        %v583 = vpop.f32.mrb[0].mxu0
        %v584 = vadd.f32 0.0, %v583
        %v585 = vpop.f32.mrb[0].mxu0
        %v586 = vadd.f32 0.0, %v585
        %587 = vmatprep.mubr.f32.mxu0 0.0
        %588 = vmatmul.mubr.f32.gmra.mrb[0].mxu0 %v312
        %v589 = vpop.f32.mrb[0].mxu0
        %v590 = vadd.f32 0.0, %v589
        %v591 = vpop.f32.mrb[0].mxu0
        %v592 = vadd.f32 0.0, %v591
        %593 = vmatprep.mubr.f32.mxu0 0.0
        %594 = vmatmul.mubr.f32.gmra.mrb[0].mxu0 %v315
        %v595 = vpop.f32.mrb[0].mxu0
        %v596 = vadd.f32 0.0, %v595
        %v597 = vpop.f32.mrb[0].mxu0
        %v598 = vadd.f32 0.0, %v597
        %599 = vmatprep.mubr.f32.mxu0 0.0
        %600 = vmatmul.mubr.f32.gmra.mrb[0].mxu0 %v318
        %v601 = vpop.f32.mrb[0].mxu0
        %v602 = vadd.f32 0.0, %v601
        %v603 = vpop.f32.mrb[0].mxu0
        %v604 = vadd.f32 0.0, %v603
        %605 = vmatprep.mubr.f32.mxu0 0.0
        %606 = vmatmul.mubr.f32.gmra.mrb[0].mxu0 %v321
        %v607 = vpop.f32.mrb[0].mxu0
        %v608 = vadd.f32 0.0, %v607
        %v609 = vpop.f32.mrb[0].mxu0
        %v610 = vadd.f32 0.0, %v609
        %611 = vmatprep.mubr.f32.mxu0 0.0
        %612 = vmatmul.mubr.f32.gmra.mrb[0].mxu0 %v324
        %v613 = vpop.f32.mrb[0].mxu0
        %v614 = vadd.f32 0.0, %v613
        %v615 = vpop.f32.mrb[0].mxu0
        %v616 = vadd.f32 0.0, %v615
        %617 = vmatprep.mubr.f32.mxu0 0.0
        %618 = vmatmul.mubr.f32.gmra.mrb[0].mxu0 %v327
        %v619 = vpop.f32.mrb[0].mxu0
        %v620 = vadd.f32 0.0, %v619
        %v621 = vpop.f32.mrb[0].mxu0
        %v622 = vadd.f32 0.0, %v621
        %623 = vmatprep.mubr.f32.mxu0 0.0
        %624 = vmatmul.mubr.f32.gmra.mrb[0].mxu0 %v330
        %v625 = vpop.f32.mrb[0].mxu0
        %v626 = vadd.f32 0.0, %v625
        %v627 = vpop.f32.mrb[0].mxu0
        %v628 = vadd.f32 0.0, %v627
        %629 = vmatprep.mubr.f32.mxu0 0.0
        %630 = vmatmul.mubr.f32.gmra.mrb[0].mxu0 %v333
        %v631 = vpop.f32.mrb[0].mxu0
        %v632 = vadd.f32 0.0, %v631
        %v633 = vpop.f32.mrb[0].mxu0
        %v634 = vadd.f32 0.0, %v633
        %635 = vmatprep.mubr.f32.mxu0 0.0
        %636 = vmatmul.mubr.f32.gmra.mrb[0].mxu0 %v336
        %v637 = vpop.f32.mrb[0].mxu0
        %v638 = vadd.f32 0.0, %v637
        %v639 = vpop.f32.mrb[0].mxu0
        %v640 = vadd.f32 0.0, %v639
        %641 = vmatprep.mubr.f32.mxu0 0.0
        %642 = vmatmul.mubr.f32.gmra.mrb[0].mxu0 %v339
        %v643 = vpop.f32.mrb[0].mxu0
        %v644 = vadd.f32 0.0, %v643
        %v645 = vpop.f32.mrb[0].mxu0
        %v646 = vadd.f32 0.0, %v645
        %647 = vmatprep.mubr.f32.mxu0 0.0
        %648 = vmatmul.mubr.f32.gmra.mrb[0].mxu0 %v342
        %v649 = vpop.f32.mrb[0].mxu0
        %v650 = vadd.f32 0.0, %v649
        %v651 = vpop.f32.mrb[0].mxu0
        %v652 = vadd.f32 0.0, %v651
        %653 = vmatprep.mubr.f32.mxu0 0.0
        %654 = vmatmul.mubr.f32.gmra.mrb[0].mxu0 %v345
        %v655 = vpop.f32.mrb[0].mxu0
        %v656 = vadd.f32 0.0, %v655
        %v657 = vpop.f32.mrb[0].mxu0
        %v658 = vadd.f32 0.0, %v657
        %659 = vmatprep.mubr.f32.mxu0 0.0
        %660 = vmatmul.mubr.f32.gmra.mrb[0].mxu0 %v348
        %v661 = vpop.f32.mrb[0].mxu0
        %v662 = vadd.f32 0.0, %v661
        %v663 = vpop.f32.mrb[0].mxu0
        %v664 = vadd.f32 0.0, %v663
        %665 = vmatprep.mubr.f32.mxu0 0.0
        %666 = vmatmul.mubr.f32.gmra.mrb[0].mxu0 %v351
        %v667 = vpop.f32.mrb[0].mxu0
        %v668 = vadd.f32 0.0, %v667
        %v669 = vpop.f32.mrb[0].mxu0
        %v670 = vadd.f32 0.0, %v669
        %671 = vmatprep.mubr.f32.mxu0 0.0
        %672 = vmatmul.mubr.f32.gmra.mrb[0].mxu0 %v354
        %v673 = vpop.f32.mrb[0].mxu0
        %v674 = vadd.f32 0.0, %v673
        %v675 = vpop.f32.mrb[0].mxu0
        %v676 = vadd.f32 0.0, %v675
        %677 = vmatprep.mubr.f32.mxu0 0.0
        %678 = vmatmul.mubr.f32.gmra.mrb[0].mxu0 %v357
        %v679 = vpop.f32.mrb[0].mxu0
        %v680 = vadd.f32 0.0, %v679
        %v681 = vpop.f32.mrb[0].mxu0
        %v682 = vadd.f32 0.0, %v681
        %683 = vmatprep.mubr.f32.mxu0 0.0
        %684 = vmatmul.mubr.f32.gmra.mrb[0].mxu0 %v360
        %v685 = vpop.f32.mrb[0].mxu0
        %v686 = vadd.f32 0.0, %v685
        %v687 = vpop.f32.mrb[0].mxu0
        %v688 = vadd.f32 0.0, %v687
        %689 = vmatprep.mubr.f32.mxu0 0.0
        %690 = vmatmul.mubr.f32.gmra.mrb[0].mxu0 %v363
        %v691 = vpop.f32.mrb[0].mxu0
        %v692 = vadd.f32 0.0, %v691
        %v693 = vpop.f32.mrb[0].mxu0
        %v694 = vadd.f32 0.0, %v693
        %695 = vmatprep.mubr.f32.mxu0 0.0
        %696 = vmatmul.mubr.f32.gmra.mrb[0].mxu0 %v366
        %v697 = vpop.f32.mrb[0].mxu0
        %v698 = vadd.f32 0.0, %v697
        %v699 = vpop.f32.mrb[0].mxu0
        %v700 = vadd.f32 0.0, %v699
        %701 = vmatprep.mubr.f32.mxu0 0.0
        %702 = vmatmul.mubr.f32.gmra.mrb[0].mxu0 %v369
        %v703 = vpop.f32.mrb[0].mxu0
        %v704 = vadd.f32 0.0, %v703
        %v705 = vpop.f32.mrb[0].mxu0
        %v706 = vadd.f32 0.0, %v705
        %707 = vmatprep.mubr.f32.mxu0 0.0
        %708 = vmatmul.mubr.f32.gmra.mrb[0].mxu0 %v372
        %v709 = vpop.f32.mrb[0].mxu0
        %v710 = vadd.f32 0.0, %v709
        %v711 = vpop.f32.mrb[0].mxu0
        %v712 = vadd.f32 0.0, %v711
        %713 = vmatprep.mubr.f32.mxu0 0.0
        %714 = vmatmul.mubr.f32.gmra.mrb[0].mxu0 %v375
        %v715 = vpop.f32.mrb[0].mxu0
        %v716 = vadd.f32 0.0, %v715
        %v717 = vpop.f32.mrb[0].mxu0
        %v718 = vadd.f32 0.0, %v717
        %719 = vmatprep.mubr.f32.mxu0 0.0
        %720 = vmatmul.mubr.f32.gmra.mrb[0].mxu0 %v378
        %v721 = vpop.f32.mrb[0].mxu0
        %v722 = vadd.f32 0.0, %v721
        %v723 = vpop.f32.mrb[0].mxu0
        %v724 = vadd.f32 0.0, %v723
        %725 = vmatprep.mubr.f32.mxu0 0.0
        %726 = vmatmul.mubr.f32.gmra.mrb[0].mxu0 %v381
        %v727 = vpop.f32.mrb[0].mxu0
        %v728 = vadd.f32 0.0, %v727
        %v729 = vpop.f32.mrb[0].mxu0
        %v730 = vadd.f32 0.0, %v729
        %731 = vmatprep.mubr.f32.mxu0 0.0
        %732 = vmatmul.mubr.f32.gmra.mrb[0].mxu0 %v384
        %v733 = vpop.f32.mrb[0].mxu0
        %v734 = vadd.f32 0.0, %v733
        %v735 = vpop.f32.mrb[0].mxu0
        %v736 = vadd.f32 0.0, %v735
        %737 = vmatprep.mubr.f32.mxu0 0.0
        %738 = vmatmul.mubr.f32.gmra.mrb[0].mxu0 %v387
        %v739 = vpop.f32.mrb[0].mxu0
        %v740 = vadd.f32 0.0, %v739
        %v741 = vpop.f32.mrb[0].mxu0
        %v742 = vadd.f32 0.0, %v741
        %743 = vmatprep.mubr.f32.mxu0 0.0
        %744 = vmatmul.mubr.f32.gmra.mrb[0].mxu0 %v390
        %v745 = vpop.f32.mrb[0].mxu0
        %v746 = vadd.f32 0.0, %v745
        %v747 = vpop.f32.mrb[0].mxu0
        %v748 = vadd.f32 0.0, %v747
        %749 = vdwg.mxu0
        %750 = vst [vmem:[#allocation2] sm:$0xff] %v464
        %751 = vst [vmem:[#allocation2 + $0x8] sm:$0xff] %v466
        %752 = vst [vmem:[#allocation2 + $0x10] sm:$0xff] %v470
        %753 = vst [vmem:[#allocation2 + $0x18] sm:$0xff] %v472
        %754 = vst [vmem:[#allocation2 + $0x20] sm:$0xff] %v476
        %755 = vst [vmem:[#allocation2 + $0x28] sm:$0xff] %v478
        %756 = vst [vmem:[#allocation2 + $0x30] sm:$0xff] %v482
        %757 = vst [vmem:[#allocation2 + $0x38] sm:$0xff] %v484
        %758 = vst [vmem:[#allocation2 + $0x40] sm:$0xff] %v488
        %759 = vst [vmem:[#allocation2 + $0x48] sm:$0xff] %v490
        %760 = vst [vmem:[#allocation2 + $0x50] sm:$0xff] %v494
        %761 = vst [vmem:[#allocation2 + $0x58] sm:$0xff] %v496
        %762 = vst [vmem:[#allocation2 + $0x60] sm:$0xff] %v500
        %763 = vst [vmem:[#allocation2 + $0x68] sm:$0xff] %v502
        %764 = vst [vmem:[#allocation2 + $0x70] sm:$0xff] %v506
        %765 = vst [vmem:[#allocation2 + $0x78] sm:$0xff] %v508
        %766 = vst [vmem:[#allocation2 + $0x80] sm:$0xff] %v512
        %767 = vst [vmem:[#allocation2 + $0x88] sm:$0xff] %v514
        %768 = vst [vmem:[#allocation2 + $0x90] sm:$0xff] %v518
        %769 = vst [vmem:[#allocation2 + $0x98] sm:$0xff] %v520
        %770 = vst [vmem:[#allocation2 + $0xa0] sm:$0xff] %v524
        %771 = vst [vmem:[#allocation2 + $0xa8] sm:$0xff] %v526
        %772 = vst [vmem:[#allocation2 + $0xb0] sm:$0xff] %v530
        %773 = vst [vmem:[#allocation2 + $0xb8] sm:$0xff] %v532
        %774 = vst [vmem:[#allocation2 + $0xc0] sm:$0xff] %v536
        %775 = vst [vmem:[#allocation2 + $0xc8] sm:$0xff] %v538
        %776 = vst [vmem:[#allocation2 + $0xd0] sm:$0xff] %v542
        %777 = vst [vmem:[#allocation2 + $0xd8] sm:$0xff] %v544
        %778 = vst [vmem:[#allocation2 + $0xe0] sm:$0xff] %v548
        %779 = vst [vmem:[#allocation2 + $0xe8] sm:$0xff] %v550
        %780 = vst [vmem:[#allocation2 + $0xf0] sm:$0xff] %v554
        %781 = vst [vmem:[#allocation2 + $0xf8] sm:$0xff] %v556
        %782 = vst [vmem:[#allocation2 + $0x100] sm:$0xff] %v560
        %783 = vst [vmem:[#allocation2 + $0x108] sm:$0xff] %v562
        %784 = vst [vmem:[#allocation2 + $0x110] sm:$0xff] %v566
        %785 = vst [vmem:[#allocation2 + $0x118] sm:$0xff] %v568
        %786 = vst [vmem:[#allocation2 + $0x120] sm:$0xff] %v572
        %787 = vst [vmem:[#allocation2 + $0x128] sm:$0xff] %v574
        %788 = vst [vmem:[#allocation2 + $0x130] sm:$0xff] %v578
        %789 = vst [vmem:[#allocation2 + $0x138] sm:$0xff] %v580
        %790 = vst [vmem:[#allocation2 + $0x140] sm:$0xff] %v584
        %791 = vst [vmem:[#allocation2 + $0x148] sm:$0xff] %v586
        %792 = vst [vmem:[#allocation2 + $0x150] sm:$0xff] %v590
        %793 = vst [vmem:[#allocation2 + $0x158] sm:$0xff] %v592
        %794 = vst [vmem:[#allocation2 + $0x160] sm:$0xff] %v596
        %795 = vst [vmem:[#allocation2 + $0x168] sm:$0xff] %v598
        %796 = vst [vmem:[#allocation2 + $0x170] sm:$0xff] %v602
        %797 = vst [vmem:[#allocation2 + $0x178] sm:$0xff] %v604
        %798 = vst [vmem:[#allocation2 + $0x180] sm:$0xff] %v608
        %799 = vst [vmem:[#allocation2 + $0x188] sm:$0xff] %v610
        %800 = vst [vmem:[#allocation2 + $0x190] sm:$0xff] %v614
        %801 = vst [vmem:[#allocation2 + $0x198] sm:$0xff] %v616
        %802 = vst [vmem:[#allocation2 + $0x1a0] sm:$0xff] %v620
        %803 = vst [vmem:[#allocation2 + $0x1a8] sm:$0xff] %v622
        %804 = vst [vmem:[#allocation2 + $0x1b0] sm:$0xff] %v626
        %805 = vst [vmem:[#allocation2 + $0x1b8] sm:$0xff] %v628
        %806 = vst [vmem:[#allocation2 + $0x1c0] sm:$0xff] %v632
        %807 = vst [vmem:[#allocation2 + $0x1c8] sm:$0xff] %v634
        %808 = vst [vmem:[#allocation2 + $0x1d0] sm:$0xff] %v638
        %809 = vst [vmem:[#allocation2 + $0x1d8] sm:$0xff] %v640
        %810 = vst [vmem:[#allocation2 + $0x1e0] sm:$0xff] %v644
        %811 = vst [vmem:[#allocation2 + $0x1e8] sm:$0xff] %v646
        %812 = vst [vmem:[#allocation2 + $0x1f0] sm:$0xff] %v650
        %813 = vst [vmem:[#allocation2 + $0x1f8] sm:$0xff] %v652
        %814 = vst [vmem:[#allocation2 + $0x200] sm:$0xff] %v656
        %815 = vst [vmem:[#allocation2 + $0x208] sm:$0xff] %v658
        %816 = vst [vmem:[#allocation2 + $0x210] sm:$0xff] %v662
        %817 = vst [vmem:[#allocation2 + $0x218] sm:$0xff] %v664
        %818 = vst [vmem:[#allocation2 + $0x220] sm:$0xff] %v668
        %819 = vst [vmem:[#allocation2 + $0x228] sm:$0xff] %v670
        %820 = vst [vmem:[#allocation2 + $0x230] sm:$0xff] %v674
        %821 = vst [vmem:[#allocation2 + $0x238] sm:$0xff] %v676
        %822 = vst [vmem:[#allocation2 + $0x240] sm:$0xff] %v680
        %823 = vst [vmem:[#allocation2 + $0x248] sm:$0xff] %v682
        %824 = vst [vmem:[#allocation2 + $0x250] sm:$0xff] %v686
        %825 = vst [vmem:[#allocation2 + $0x258] sm:$0xff] %v688
        %826 = vst [vmem:[#allocation2 + $0x260] sm:$0xff] %v692
        %827 = vst [vmem:[#allocation2 + $0x268] sm:$0xff] %v694
        %828 = vst [vmem:[#allocation2 + $0x270] sm:$0xff] %v698
        %829 = vst [vmem:[#allocation2 + $0x278] sm:$0xff] %v700
        %830 = vst [vmem:[#allocation2 + $0x280] sm:$0xff] %v704
        %831 = vst [vmem:[#allocation2 + $0x288] sm:$0xff] %v706
        %832 = vst [vmem:[#allocation2 + $0x290] sm:$0xff] %v710
        %833 = vst [vmem:[#allocation2 + $0x298] sm:$0xff] %v712
        %834 = vst [vmem:[#allocation2 + $0x2a0] sm:$0xff] %v716
        %835 = vst [vmem:[#allocation2 + $0x2a8] sm:$0xff] %v718
        %836 = vst [vmem:[#allocation2 + $0x2b0] sm:$0xff] %v722
        %837 = vst [vmem:[#allocation2 + $0x2b8] sm:$0xff] %v724
        %838 = vst [vmem:[#allocation2 + $0x2c0] sm:$0xff] %v728
        %839 = vst [vmem:[#allocation2 + $0x2c8] sm:$0xff] %v730
        %840 = vst [vmem:[#allocation2 + $0x2d0] sm:$0xff] %v734
        %841 = vst [vmem:[#allocation2 + $0x2d8] sm:$0xff] %v736
        %842 = vst [vmem:[#allocation2 + $0x2e0] sm:$0xff] %v740
        %843 = vst [vmem:[#allocation2 + $0x2e8] sm:$0xff] %v742
        %844 = vst [vmem:[#allocation2 + $0x2f0] sm:$0xff] %v746
        %845 = vst [vmem:[#allocation2 + $0x2f8] sm:$0xff] %v748
        %v846 = vld [vmem:[#allocation2] sm:$0xff]
        %v847 = vld [vmem:[#allocation2 + $0x8] sm:$0xff]
        %v848 = vld [vmem:[#allocation2 + $0x10] sm:$0xff]
        %v849 = vld [vmem:[#allocation2 + $0x18] sm:$0xff]
        %v850 = vld [vmem:[#allocation2 + $0x20] sm:$0xff]
        %v851 = vld [vmem:[#allocation2 + $0x28] sm:$0xff]
        %v852 = vld [vmem:[#allocation2 + $0x30] sm:$0xff]
        %v853 = vld [vmem:[#allocation2 + $0x38] sm:$0xff]
        %v854 = vld [vmem:[#allocation2 + $0x100] sm:$0xff]
        %v855 = vld [vmem:[#allocation2 + $0x108] sm:$0xff]
        %v856 = vld [vmem:[#allocation2 + $0x110] sm:$0xff]
        %v857 = vld [vmem:[#allocation2 + $0x118] sm:$0xff]
        %v858 = vld [vmem:[#allocation2 + $0x120] sm:$0xff]
        %v859 = vld [vmem:[#allocation2 + $0x128] sm:$0xff]
        %v860 = vld [vmem:[#allocation2 + $0x130] sm:$0xff]
        %v861 = vld [vmem:[#allocation2 + $0x138] sm:$0xff]
        %v862 = vld [vmem:[#allocation2 + $0x200] sm:$0xff]
        %v863 = vld [vmem:[#allocation2 + $0x208] sm:$0xff]
        %v864 = vld [vmem:[#allocation2 + $0x210] sm:$0xff]
        %v865 = vld [vmem:[#allocation2 + $0x218] sm:$0xff]
        %v866 = vld [vmem:[#allocation2 + $0x220] sm:$0xff]
        %v867 = vld [vmem:[#allocation2 + $0x228] sm:$0xff]
        %v868 = vld [vmem:[#allocation2 + $0x230] sm:$0xff]
        %v869 = vld [vmem:[#allocation2 + $0x238] sm:$0xff]
        %v870 = vmax.f32 %v854, %v855
        %871 = vmax.xlane.f32.xlu0 %v870
        %v872 = vpop.xlane.xlu0 %871
        %v873 = vmax.f32 %v856, %v857
        %874 = vmax.xlane.f32.xlu0 %v873
        %v875 = vpop.xlane.xlu0 %874
        %v876 = vmax.f32 %v858, %v859
        %877 = vmax.xlane.f32.xlu0 %v876
        %v878 = vpop.xlane.xlu0 %877
        %v879 = vmax.f32 %v860, %v861
        %880 = vmax.xlane.f32.xlu0 %v879
        %v881 = vpop.xlane.xlu0 %880
        %v882 = vsub.f32 %v854, %v872
        %v883 = vsub.f32 %v855, %v872
        %v884 = vsub.f32 %v856, %v875
        %v885 = vsub.f32 %v857, %v875
        %v886 = vsub.f32 %v858, %v878
        %v887 = vsub.f32 %v859, %v878
        %v888 = vsub.f32 %v860, %v881
        %v889 = vsub.f32 %v861, %v881
        %v890 = vmul.f32 %v882, 1.442695
        %v891 = vpow.pop %v890
        %v892 = vmul.f32 %v883, 1.442695
        %v893 = vpow.pop %v892
        %v894 = vmul.f32 %v884, 1.442695
        %v895 = vpow.pop %v894
        %v896 = vmul.f32 %v885, 1.442695
        %v897 = vpow.pop %v896
        %v898 = vmul.f32 %v886, 1.442695
        %v899 = vpow.pop %v898
        %v900 = vmul.f32 %v887, 1.442695
        %v901 = vpow.pop %v900
        %v902 = vmul.f32 %v888, 1.442695
        %v903 = vpow.pop %v902
        %v904 = vmul.f32 %v889, 1.442695
        %v905 = vpow.pop %v904
        %v906 = vadd.f32 %v891, %v893
        %907 = vadd.xlane.f32.xlu0 %v906
        %v908 = vpop.xlane.xlu0 %907
        %v909 = vadd.f32 %v895, %v897
        %910 = vadd.xlane.f32.xlu0 %v909
        %v911 = vpop.xlane.xlu0 %910
        %v912 = vadd.f32 %v899, %v901
        %913 = vadd.xlane.f32.xlu0 %v912
        %v914 = vpop.xlane.xlu0 %913
        %v915 = vadd.f32 %v903, %v905
        %916 = vadd.xlane.f32.xlu0 %v915
        %v917 = vpop.xlane.xlu0 %916
        %v918 = vrcp.pop %v908
        %v919 = vrcp.pop %v911
        %v920 = vrcp.pop %v914
        %v921 = vrcp.pop %v917
        %922 = vmatprep.subr.mxu0 %v863
        %923 = vmatpush1.xpose.msra.mxu0 %v862
        %924 = vmatprep.subr.mxu0 %v865
        %925 = vmatpush1.xpose.msra.mxu0 %v864
        %926 = vmatprep.subr.mxu0 %v867
        %927 = vmatpush1.xpose.msra.mxu0 %v866
        %928 = vmatprep.subr.mxu0 %v869
        %929 = vmatpush1.xpose.msra.mxu0 %v868
        %930 = vmatprep.subr.mxu0 0.0
        %931 = vmatpush1.xpose.msra.mxu0 0.0
        %932 = vmatprep.subr.mxu0 0.0
        %933 = vmatpush1.xpose.msra.mxu0 0.0
        %934 = vmatprep.subr.mxu0 0.0
        %935 = vmatpush1.xpose.msra.mxu0 0.0
        %936 = vmatprep.subr.mxu0 0.0
        %937 = vmatpush1.xpose.msra.mxu0 0.0
        %938 = vmatprep.subr.mxu0 0.0
        %939 = vmatpush1.xpose.msra.mxu0 0.0
        %940 = vmatprep.subr.mxu0 0.0
        %941 = vmatpush1.xpose.msra.mxu0 0.0
        %942 = vmatprep.subr.mxu0 0.0
        %943 = vmatpush1.xpose.msra.mxu0 0.0
        %944 = vmatprep.subr.mxu0 0.0
        %945 = vmatpush1.xpose.msra.mxu0 0.0
        %946 = vmatprep.subr.mxu0 0.0
        %947 = vmatpush1.xpose.msra.mxu0 0.0
        %948 = vmatprep.subr.mxu0 0.0
        %949 = vmatpush1.xpose.msra.mxu0 0.0
        %950 = vmatprep.subr.mxu0 0.0
        %951 = vmatpush1.xpose.msra.mxu0 0.0
        %952 = vmatprep.subr.mxu0 0.0
        %953 = vmatpush1.xpose.msra.mxu0 0.0
        %954 = vmatprep.subr.mxu0 0.0
        %955 = vmatpush1.xpose.msra.mxu0 0.0
        %956 = vmatprep.subr.mxu0 0.0
        %957 = vmatpush1.xpose.msra.mxu0 0.0
        %958 = vmatprep.subr.mxu0 0.0
        %959 = vmatpush1.xpose.msra.mxu0 0.0
        %960 = vmatprep.subr.mxu0 0.0
        %961 = vmatpush1.xpose.msra.mxu0 0.0
        %962 = vmatprep.subr.mxu0 0.0
        %963 = vmatpush1.xpose.msra.mxu0 0.0
        %964 = vmatprep.subr.mxu0 0.0
        %965 = vmatpush1.xpose.msra.mxu0 0.0
        %966 = vmatprep.subr.mxu0 0.0
        %967 = vmatpush1.xpose.msra.mxu0 0.0
        %968 = vmatprep.subr.mxu0 0.0
        %969 = vmatpush1.xpose.msra.mxu0 0.0
        %970 = vmatprep.subr.mxu0 0.0
        %971 = vmatpush1.xpose.msra.mxu0 0.0
        %972 = vmatprep.subr.mxu0 0.0
        %973 = vmatpush1.xpose.msra.mxu0 0.0
        %974 = vmatprep.subr.mxu0 0.0
        %975 = vmatpush1.xpose.msra.mxu0 0.0
        %976 = vmatprep.subr.mxu0 0.0
        %977 = vmatpush1.xpose.msra.mxu0 0.0
        %978 = vmatprep.subr.mxu0 0.0
        %979 = vmatpush1.xpose.msra.mxu0 0.0
        %980 = vmatprep.subr.mxu0 0.0
        %981 = vmatpush1.xpose.msra.mxu0 0.0
        %982 = vmatprep.subr.mxu0 0.0
        %983 = vmatpush1.xpose.msra.mxu0 0.0
        %984 = vmatprep.subr.mxu0 0.0
        %985 = vmatpush1.xpose.msra.mxu0 0.0
        %986 = vmatprep.mubr.f32.mxu0 %v893
        %987 = vmatmul.mubr.f32.gmra.mrb[0].mxu0 %v891
        %v988 = vpop.f32.mrb[0].mxu0
        %v989 = vadd.f32 0.0, %v988
        %v990 = vpop.f32.mrb[0].mxu0
        %991 = vmatprep.mubr.f32.mxu0 %v897
        %992 = vmatmul.mubr.f32.gmra.mrb[0].mxu0 %v895
        %v993 = vpop.f32.mrb[0].mxu0
        %v994 = vadd.f32 0.0, %v993
        %v995 = vpop.f32.mrb[0].mxu0
        %996 = vmatprep.mubr.f32.mxu0 %v901
        %997 = vmatmul.mubr.f32.gmra.mrb[0].mxu0 %v899
        %v998 = vpop.f32.mrb[0].mxu0
        %v999 = vadd.f32 0.0, %v998
        %v1000 = vpop.f32.mrb[0].mxu0
        %1001 = vmatprep.mubr.f32.mxu0 %v905
        %1002 = vmatmul.mubr.f32.gmra.mrb[0].mxu0 %v903
        %v1003 = vpop.f32.mrb[0].mxu0
        %v1004 = vadd.f32 0.0, %v1003
        %v1005 = vpop.f32.mrb[0].mxu0
        %1006 = vdwg.mxu0
        %v1007 = vmul.f32 %v989, %v918
        %v1008 = vmul.f32 %v994, %v919
        %v1009 = vmul.f32 %v999, %v920
        %v1010 = vmul.f32 %v1004, %v921
        %1011 = vxpose.xlu0.b32.start [1/16] %v1007, 128
        %1012 = vxpose.xlu0.b32.cont [2/16] %v1008, 128
        %1013 = vxpose.xlu0.b32.cont [3/16] %v1009, 128
        %1014 = vxpose.xlu0.b32.cont [4/16] %v1010, 128
        %1015 = vxpose.xlu0.b32.cont [5/16] 0.0, 128
        %1016 = vxpose.xlu0.b32.cont [6/16] 0.0, 128
        %1017 = vxpose.xlu0.b32.cont [7/16] 0.0, 128
        %1018 = vxpose.xlu0.b32.cont [8/16] 0.0, 128
        %1019 = vxpose.xlu0.b32.cont [9/16] 0.0, 128
        %1020 = vxpose.xlu0.b32.cont [10/16] 0.0, 128
        %1021 = vxpose.xlu0.b32.cont [11/16] 0.0, 128
        %1022 = vxpose.xlu0.b32.cont [12/16] 0.0, 128
        %1023 = vxpose.xlu0.b32.cont [13/16] 0.0, 128
        %1024 = vxpose.xlu0.b32.cont [14/16] 0.0, 128
        %1025 = vxpose.xlu0.b32.cont [15/16] 0.0, 128
        %1026 = vxpose.xlu0.b32.end [16/16] 0.0, 128
        %v1027 = vpop.trf.xlu0
        %v1028 = vpop.trf.xlu0
        %v1029 = vpop.trf.xlu0
        %v1030 = vpop.trf.xlu0
        %v1031 = vpop.trf.xlu0
        %v1032 = vpop.trf.xlu0
        %v1033 = vpop.trf.xlu0
        %v1034 = vpop.trf.xlu0
        %v1035 = vpop.trf.xlu0
        %v1036 = vpop.trf.xlu0
        %v1037 = vpop.trf.xlu0
        %v1038 = vpop.trf.xlu0
        %v1039 = vpop.trf.xlu0
        %v1040 = vpop.trf.xlu0
        %v1041 = vpop.trf.xlu0
        %v1042 = vpop.trf.xlu0
        %vm1043 = vcmask 261120
        %v1045 = vsel %vm1043, %v1027, 0
        %v1048 = vsel %vm1043, %v1028, 0
        %v1051 = vsel %vm1043, %v1029, 0
        %v1054 = vsel %vm1043, %v1030, 0
        %1056 = vmatprep.subr.mxu0 %v847
        %1057 = vmatpush1.msra.mxu0 %v846
        %1058 = vmatprep.subr.mxu0 %v849
        %1059 = vmatpush1.msra.mxu0 %v848
        %1060 = vmatprep.subr.mxu0 %v851
        %1061 = vmatpush1.msra.mxu0 %v850
        %1062 = vmatprep.subr.mxu0 %v853
        %1063 = vmatpush1.msra.mxu0 %v852
        %1064 = vmatprep.subr.mxu0 0.0
        %1065 = vmatpush1.msra.mxu0 0.0
        %1066 = vmatprep.subr.mxu0 0.0
        %1067 = vmatpush1.msra.mxu0 0.0
        %1068 = vmatprep.subr.mxu0 0.0
        %1069 = vmatpush1.msra.mxu0 0.0
        %1070 = vmatprep.subr.mxu0 0.0
        %1071 = vmatpush1.msra.mxu0 0.0
        %1072 = vmatprep.subr.mxu0 0.0
        %1073 = vmatpush1.msra.mxu0 0.0
        %1074 = vmatprep.subr.mxu0 0.0
        %1075 = vmatpush1.msra.mxu0 0.0
        %1076 = vmatprep.subr.mxu0 0.0
        %1077 = vmatpush1.msra.mxu0 0.0
        %1078 = vmatprep.subr.mxu0 0.0
        %1079 = vmatpush1.msra.mxu0 0.0
        %1080 = vmatprep.subr.mxu0 0.0
        %1081 = vmatpush1.msra.mxu0 0.0
        %1082 = vmatprep.subr.mxu0 0.0
        %1083 = vmatpush1.msra.mxu0 0.0
        %1084 = vmatprep.subr.mxu0 0.0
        %1085 = vmatpush1.msra.mxu0 0.0
        %1086 = vmatprep.subr.mxu0 0.0
        %1087 = vmatpush1.msra.mxu0 0.0
        %1088 = vmatprep.subr.mxu0 0.0
        %1089 = vmatpush1.msra.mxu0 0.0
        %1090 = vmatprep.subr.mxu0 0.0
        %1091 = vmatpush1.msra.mxu0 0.0
        %1092 = vmatprep.subr.mxu0 0.0
        %1093 = vmatpush1.msra.mxu0 0.0
        %1094 = vmatprep.subr.mxu0 0.0
        %1095 = vmatpush1.msra.mxu0 0.0
        %1096 = vmatprep.subr.mxu0 0.0
        %1097 = vmatpush1.msra.mxu0 0.0
        %1098 = vmatprep.subr.mxu0 0.0
        %1099 = vmatpush1.msra.mxu0 0.0
        %1100 = vmatprep.subr.mxu0 0.0
        %1101 = vmatpush1.msra.mxu0 0.0
        %1102 = vmatprep.subr.mxu0 0.0
        %1103 = vmatpush1.msra.mxu0 0.0
        %1104 = vmatprep.subr.mxu0 0.0
        %1105 = vmatpush1.msra.mxu0 0.0
        %1106 = vmatprep.subr.mxu0 0.0
        %1107 = vmatpush1.msra.mxu0 0.0
        %1108 = vmatprep.subr.mxu0 0.0
        %1109 = vmatpush1.msra.mxu0 0.0
        %1110 = vmatprep.subr.mxu0 0.0
        %1111 = vmatpush1.msra.mxu0 0.0
        %1112 = vmatprep.subr.mxu0 0.0
        %1113 = vmatpush1.msra.mxu0 0.0
        %1114 = vmatprep.subr.mxu0 0.0
        %1115 = vmatpush1.msra.mxu0 0.0
        %1116 = vmatprep.subr.mxu0 0.0
        %1117 = vmatpush1.msra.mxu0 0.0
        %1118 = vmatprep.subr.mxu0 0.0
        %1119 = vmatpush1.msra.mxu0 0.0
        %1120 = vmatprep.mubr.f32.mxu0 0.0
        %1121 = vmatmul.mubr.f32.gmra.mrb[0].mxu0 %v1045
        %v1122 = vpop.f32.mrb[0].mxu0
        %v1123 = vadd.f32 0.0, %v1122
        %v1124 = vpop.f32.mrb[0].mxu0
        %v1125 = vadd.f32 0.0, %v1124
        %1126 = vmatprep.mubr.f32.mxu0 0.0
        %1127 = vmatmul.mubr.f32.gmra.mrb[0].mxu0 %v1048
        %v1128 = vpop.f32.mrb[0].mxu0
        %v1129 = vadd.f32 0.0, %v1128
        %v1130 = vpop.f32.mrb[0].mxu0
        %v1131 = vadd.f32 0.0, %v1130
        %1132 = vmatprep.mubr.f32.mxu0 0.0
        %1133 = vmatmul.mubr.f32.gmra.mrb[0].mxu0 %v1051
        %v1134 = vpop.f32.mrb[0].mxu0
        %v1135 = vadd.f32 0.0, %v1134
        %v1136 = vpop.f32.mrb[0].mxu0
        %v1137 = vadd.f32 0.0, %v1136
        %1138 = vmatprep.mubr.f32.mxu0 0.0
        %1139 = vmatmul.mubr.f32.gmra.mrb[0].mxu0 %v1054
        %v1140 = vpop.f32.mrb[0].mxu0
        %v1141 = vadd.f32 0.0, %v1140
        %v1142 = vpop.f32.mrb[0].mxu0
        %v1143 = vadd.f32 0.0, %v1142
        %1144 = vdwg.mxu0
        %1145 = vst [vmem:[#allocation3] sm:$0xff] %v1123
        %1146 = vst [vmem:[#allocation3 + $0x8] sm:$0xff] %v1125
        %1147 = vst [vmem:[#allocation3 + $0x10] sm:$0xff] %v1129
        %1148 = vst [vmem:[#allocation3 + $0x18] sm:$0xff] %v1131
        %1149 = vst [vmem:[#allocation3 + $0x20] sm:$0xff] %v1135
        %1150 = vst [vmem:[#allocation3 + $0x28] sm:$0xff] %v1137
        %1151 = vst [vmem:[#allocation3 + $0x30] sm:$0xff] %v1141
        %1152 = vst [vmem:[#allocation3 + $0x38] sm:$0xff] %v1143
        %v1153 = vld [vmem:[#allocation2 + $0x40] sm:$0xff]
        %v1154 = vld [vmem:[#allocation2 + $0x48] sm:$0xff]
        %v1155 = vld [vmem:[#allocation2 + $0x50] sm:$0xff]
        %v1156 = vld [vmem:[#allocation2 + $0x58] sm:$0xff]
        %v1157 = vld [vmem:[#allocation2 + $0x60] sm:$0xff]
        %v1158 = vld [vmem:[#allocation2 + $0x68] sm:$0xff]
        %v1159 = vld [vmem:[#allocation2 + $0x70] sm:$0xff]
        %v1160 = vld [vmem:[#allocation2 + $0x78] sm:$0xff]
        %v1161 = vld [vmem:[#allocation2 + $0x140] sm:$0xff]
        %v1162 = vld [vmem:[#allocation2 + $0x148] sm:$0xff]
        %v1163 = vld [vmem:[#allocation2 + $0x150] sm:$0xff]
        %v1164 = vld [vmem:[#allocation2 + $0x158] sm:$0xff]
        %v1165 = vld [vmem:[#allocation2 + $0x160] sm:$0xff]
        %v1166 = vld [vmem:[#allocation2 + $0x168] sm:$0xff]
        %v1167 = vld [vmem:[#allocation2 + $0x170] sm:$0xff]
        %v1168 = vld [vmem:[#allocation2 + $0x178] sm:$0xff]
        %v1169 = vld [vmem:[#allocation2 + $0x240] sm:$0xff]
        %v1170 = vld [vmem:[#allocation2 + $0x248] sm:$0xff]
        %v1171 = vld [vmem:[#allocation2 + $0x250] sm:$0xff]
        %v1172 = vld [vmem:[#allocation2 + $0x258] sm:$0xff]
        %v1173 = vld [vmem:[#allocation2 + $0x260] sm:$0xff]
        %v1174 = vld [vmem:[#allocation2 + $0x268] sm:$0xff]
        %v1175 = vld [vmem:[#allocation2 + $0x270] sm:$0xff]
        %v1176 = vld [vmem:[#allocation2 + $0x278] sm:$0xff]
        %v1177 = vmax.f32 %v1161, %v1162
        %1178 = vmax.xlane.f32.xlu0 %v1177
        %v1179 = vpop.xlane.xlu0 %1178
        %v1180 = vmax.f32 %v1163, %v1164
        %1181 = vmax.xlane.f32.xlu0 %v1180
        %v1182 = vpop.xlane.xlu0 %1181
        %v1183 = vmax.f32 %v1165, %v1166
        %1184 = vmax.xlane.f32.xlu0 %v1183
        %v1185 = vpop.xlane.xlu0 %1184
        %v1186 = vmax.f32 %v1167, %v1168
        %1187 = vmax.xlane.f32.xlu0 %v1186
        %v1188 = vpop.xlane.xlu0 %1187
        %v1189 = vsub.f32 %v1161, %v1179
        %v1190 = vsub.f32 %v1162, %v1179
        %v1191 = vsub.f32 %v1163, %v1182
        %v1192 = vsub.f32 %v1164, %v1182
        %v1193 = vsub.f32 %v1165, %v1185
        %v1194 = vsub.f32 %v1166, %v1185
        %v1195 = vsub.f32 %v1167, %v1188
        %v1196 = vsub.f32 %v1168, %v1188
        %v1197 = vmul.f32 %v1189, 1.442695
        %v1198 = vpow.pop %v1197
        %v1199 = vmul.f32 %v1190, 1.442695
        %v1200 = vpow.pop %v1199
        %v1201 = vmul.f32 %v1191, 1.442695
        %v1202 = vpow.pop %v1201
        %v1203 = vmul.f32 %v1192, 1.442695
        %v1204 = vpow.pop %v1203
        %v1205 = vmul.f32 %v1193, 1.442695
        %v1206 = vpow.pop %v1205
        %v1207 = vmul.f32 %v1194, 1.442695
        %v1208 = vpow.pop %v1207
        %v1209 = vmul.f32 %v1195, 1.442695
        %v1210 = vpow.pop %v1209
        %v1211 = vmul.f32 %v1196, 1.442695
        %v1212 = vpow.pop %v1211
        %v1213 = vadd.f32 %v1198, %v1200
        %1214 = vadd.xlane.f32.xlu0 %v1213
        %v1215 = vpop.xlane.xlu0 %1214
        %v1216 = vadd.f32 %v1202, %v1204
        %1217 = vadd.xlane.f32.xlu0 %v1216
        %v1218 = vpop.xlane.xlu0 %1217
        %v1219 = vadd.f32 %v1206, %v1208
        %1220 = vadd.xlane.f32.xlu0 %v1219
        %v1221 = vpop.xlane.xlu0 %1220
        %v1222 = vadd.f32 %v1210, %v1212
        %1223 = vadd.xlane.f32.xlu0 %v1222
        %v1224 = vpop.xlane.xlu0 %1223
        %v1225 = vrcp.pop %v1215
        %v1226 = vrcp.pop %v1218
        %v1227 = vrcp.pop %v1221
        %v1228 = vrcp.pop %v1224
        %1229 = vmatprep.subr.mxu0 %v1170
        %1230 = vmatpush1.xpose.msra.mxu0 %v1169
        %1231 = vmatprep.subr.mxu0 %v1172
        %1232 = vmatpush1.xpose.msra.mxu0 %v1171
        %1233 = vmatprep.subr.mxu0 %v1174
        %1234 = vmatpush1.xpose.msra.mxu0 %v1173
        %1235 = vmatprep.subr.mxu0 %v1176
        %1236 = vmatpush1.xpose.msra.mxu0 %v1175
        %1237 = vmatprep.subr.mxu0 0.0
        %1238 = vmatpush1.xpose.msra.mxu0 0.0
        %1239 = vmatprep.subr.mxu0 0.0
        %1240 = vmatpush1.xpose.msra.mxu0 0.0
        %1241 = vmatprep.subr.mxu0 0.0
        %1242 = vmatpush1.xpose.msra.mxu0 0.0
        %1243 = vmatprep.subr.mxu0 0.0
        %1244 = vmatpush1.xpose.msra.mxu0 0.0
        %1245 = vmatprep.subr.mxu0 0.0
        %1246 = vmatpush1.xpose.msra.mxu0 0.0
        %1247 = vmatprep.subr.mxu0 0.0
        %1248 = vmatpush1.xpose.msra.mxu0 0.0
        %1249 = vmatprep.subr.mxu0 0.0
        %1250 = vmatpush1.xpose.msra.mxu0 0.0
        %1251 = vmatprep.subr.mxu0 0.0
        %1252 = vmatpush1.xpose.msra.mxu0 0.0
        %1253 = vmatprep.subr.mxu0 0.0
        %1254 = vmatpush1.xpose.msra.mxu0 0.0
        %1255 = vmatprep.subr.mxu0 0.0
        %1256 = vmatpush1.xpose.msra.mxu0 0.0
        %1257 = vmatprep.subr.mxu0 0.0
        %1258 = vmatpush1.xpose.msra.mxu0 0.0
        %1259 = vmatprep.subr.mxu0 0.0
        %1260 = vmatpush1.xpose.msra.mxu0 0.0
        %1261 = vmatprep.subr.mxu0 0.0
        %1262 = vmatpush1.xpose.msra.mxu0 0.0
        %1263 = vmatprep.subr.mxu0 0.0
        %1264 = vmatpush1.xpose.msra.mxu0 0.0
        %1265 = vmatprep.subr.mxu0 0.0
        %1266 = vmatpush1.xpose.msra.mxu0 0.0
        %1267 = vmatprep.subr.mxu0 0.0
        %1268 = vmatpush1.xpose.msra.mxu0 0.0
        %1269 = vmatprep.subr.mxu0 0.0
        %1270 = vmatpush1.xpose.msra.mxu0 0.0
        %1271 = vmatprep.subr.mxu0 0.0
        %1272 = vmatpush1.xpose.msra.mxu0 0.0
        %1273 = vmatprep.subr.mxu0 0.0
        %1274 = vmatpush1.xpose.msra.mxu0 0.0
        %1275 = vmatprep.subr.mxu0 0.0
        %1276 = vmatpush1.xpose.msra.mxu0 0.0
        %1277 = vmatprep.subr.mxu0 0.0
        %1278 = vmatpush1.xpose.msra.mxu0 0.0
        %1279 = vmatprep.subr.mxu0 0.0
        %1280 = vmatpush1.xpose.msra.mxu0 0.0
        %1281 = vmatprep.subr.mxu0 0.0
        %1282 = vmatpush1.xpose.msra.mxu0 0.0
        %1283 = vmatprep.subr.mxu0 0.0
        %1284 = vmatpush1.xpose.msra.mxu0 0.0
        %1285 = vmatprep.subr.mxu0 0.0
        %1286 = vmatpush1.xpose.msra.mxu0 0.0
        %1287 = vmatprep.subr.mxu0 0.0
        %1288 = vmatpush1.xpose.msra.mxu0 0.0
        %1289 = vmatprep.subr.mxu0 0.0
        %1290 = vmatpush1.xpose.msra.mxu0 0.0
        %1291 = vmatprep.subr.mxu0 0.0
        %1292 = vmatpush1.xpose.msra.mxu0 0.0
        %1293 = vmatprep.mubr.f32.mxu0 %v1200
        %1294 = vmatmul.mubr.f32.gmra.mrb[0].mxu0 %v1198
        %v1295 = vpop.f32.mrb[0].mxu0
        %v1296 = vadd.f32 0.0, %v1295
        %v1297 = vpop.f32.mrb[0].mxu0
        %1298 = vmatprep.mubr.f32.mxu0 %v1204
        %1299 = vmatmul.mubr.f32.gmra.mrb[0].mxu0 %v1202
        %v1300 = vpop.f32.mrb[0].mxu0
        %v1301 = vadd.f32 0.0, %v1300
        %v1302 = vpop.f32.mrb[0].mxu0
        %1303 = vmatprep.mubr.f32.mxu0 %v1208
        %1304 = vmatmul.mubr.f32.gmra.mrb[0].mxu0 %v1206
        %v1305 = vpop.f32.mrb[0].mxu0
        %v1306 = vadd.f32 0.0, %v1305
        %v1307 = vpop.f32.mrb[0].mxu0
        %1308 = vmatprep.mubr.f32.mxu0 %v1212
        %1309 = vmatmul.mubr.f32.gmra.mrb[0].mxu0 %v1210
        %v1310 = vpop.f32.mrb[0].mxu0
        %v1311 = vadd.f32 0.0, %v1310
        %v1312 = vpop.f32.mrb[0].mxu0
        %1313 = vdwg.mxu0
        %v1314 = vmul.f32 %v1296, %v1225
        %v1315 = vmul.f32 %v1301, %v1226
        %v1316 = vmul.f32 %v1306, %v1227
        %v1317 = vmul.f32 %v1311, %v1228
        %1318 = vxpose.xlu0.b32.start [1/16] %v1314, 128
        %1319 = vxpose.xlu0.b32.cont [2/16] %v1315, 128
        %1320 = vxpose.xlu0.b32.cont [3/16] %v1316, 128
        %1321 = vxpose.xlu0.b32.cont [4/16] %v1317, 128
        %1322 = vxpose.xlu0.b32.cont [5/16] 0.0, 128
        %1323 = vxpose.xlu0.b32.cont [6/16] 0.0, 128
        %1324 = vxpose.xlu0.b32.cont [7/16] 0.0, 128
        %1325 = vxpose.xlu0.b32.cont [8/16] 0.0, 128
        %1326 = vxpose.xlu0.b32.cont [9/16] 0.0, 128
        %1327 = vxpose.xlu0.b32.cont [10/16] 0.0, 128
        %1328 = vxpose.xlu0.b32.cont [11/16] 0.0, 128
        %1329 = vxpose.xlu0.b32.cont [12/16] 0.0, 128
        %1330 = vxpose.xlu0.b32.cont [13/16] 0.0, 128
        %1331 = vxpose.xlu0.b32.cont [14/16] 0.0, 128
        %1332 = vxpose.xlu0.b32.cont [15/16] 0.0, 128
        %1333 = vxpose.xlu0.b32.end [16/16] 0.0, 128
        %v1334 = vpop.trf.xlu0
        %v1335 = vpop.trf.xlu0
        %v1336 = vpop.trf.xlu0
        %v1337 = vpop.trf.xlu0
        %v1338 = vpop.trf.xlu0
        %v1339 = vpop.trf.xlu0
        %v1340 = vpop.trf.xlu0
        %v1341 = vpop.trf.xlu0
        %v1342 = vpop.trf.xlu0
        %v1343 = vpop.trf.xlu0
        %v1344 = vpop.trf.xlu0
        %v1345 = vpop.trf.xlu0
        %v1346 = vpop.trf.xlu0
        %v1347 = vpop.trf.xlu0
        %v1348 = vpop.trf.xlu0
        %v1349 = vpop.trf.xlu0
        %v1351 = vsel %vm1043, %v1334, 0
        %v1354 = vsel %vm1043, %v1335, 0
        %v1357 = vsel %vm1043, %v1336, 0
        %v1360 = vsel %vm1043, %v1337, 0
        %1362 = vmatprep.subr.mxu0 %v1154
        %1363 = vmatpush1.msra.mxu0 %v1153
        %1364 = vmatprep.subr.mxu0 %v1156
        %1365 = vmatpush1.msra.mxu0 %v1155
        %1366 = vmatprep.subr.mxu0 %v1158
        %1367 = vmatpush1.msra.mxu0 %v1157
        %1368 = vmatprep.subr.mxu0 %v1160
        %1369 = vmatpush1.msra.mxu0 %v1159
        %1370 = vmatprep.subr.mxu0 0.0
        %1371 = vmatpush1.msra.mxu0 0.0
        %1372 = vmatprep.subr.mxu0 0.0
        %1373 = vmatpush1.msra.mxu0 0.0
        %1374 = vmatprep.subr.mxu0 0.0
        %1375 = vmatpush1.msra.mxu0 0.0
        %1376 = vmatprep.subr.mxu0 0.0
        %1377 = vmatpush1.msra.mxu0 0.0
        %1378 = vmatprep.subr.mxu0 0.0
        %1379 = vmatpush1.msra.mxu0 0.0
        %1380 = vmatprep.subr.mxu0 0.0
        %1381 = vmatpush1.msra.mxu0 0.0
        %1382 = vmatprep.subr.mxu0 0.0
        %1383 = vmatpush1.msra.mxu0 0.0
        %1384 = vmatprep.subr.mxu0 0.0
        %1385 = vmatpush1.msra.mxu0 0.0
        %1386 = vmatprep.subr.mxu0 0.0
        %1387 = vmatpush1.msra.mxu0 0.0
        %1388 = vmatprep.subr.mxu0 0.0
        %1389 = vmatpush1.msra.mxu0 0.0
        %1390 = vmatprep.subr.mxu0 0.0
        %1391 = vmatpush1.msra.mxu0 0.0
        %1392 = vmatprep.subr.mxu0 0.0
        %1393 = vmatpush1.msra.mxu0 0.0
        %1394 = vmatprep.subr.mxu0 0.0
        %1395 = vmatpush1.msra.mxu0 0.0
        %1396 = vmatprep.subr.mxu0 0.0
        %1397 = vmatpush1.msra.mxu0 0.0
        %1398 = vmatprep.subr.mxu0 0.0
        %1399 = vmatpush1.msra.mxu0 0.0
        %1400 = vmatprep.subr.mxu0 0.0
        %1401 = vmatpush1.msra.mxu0 0.0
        %1402 = vmatprep.subr.mxu0 0.0
        %1403 = vmatpush1.msra.mxu0 0.0
        %1404 = vmatprep.subr.mxu0 0.0
        %1405 = vmatpush1.msra.mxu0 0.0
        %1406 = vmatprep.subr.mxu0 0.0
        %1407 = vmatpush1.msra.mxu0 0.0
        %1408 = vmatprep.subr.mxu0 0.0
        %1409 = vmatpush1.msra.mxu0 0.0
        %1410 = vmatprep.subr.mxu0 0.0
        %1411 = vmatpush1.msra.mxu0 0.0
        %1412 = vmatprep.subr.mxu0 0.0
        %1413 = vmatpush1.msra.mxu0 0.0
        %1414 = vmatprep.subr.mxu0 0.0
        %1415 = vmatpush1.msra.mxu0 0.0
        %1416 = vmatprep.subr.mxu0 0.0
        %1417 = vmatpush1.msra.mxu0 0.0
        %1418 = vmatprep.subr.mxu0 0.0
        %1419 = vmatpush1.msra.mxu0 0.0
        %1420 = vmatprep.subr.mxu0 0.0
        %1421 = vmatpush1.msra.mxu0 0.0
        %1422 = vmatprep.subr.mxu0 0.0
        %1423 = vmatpush1.msra.mxu0 0.0
        %1424 = vmatprep.subr.mxu0 0.0
        %1425 = vmatpush1.msra.mxu0 0.0
        %1426 = vmatprep.mubr.f32.mxu0 0.0
        %1427 = vmatmul.mubr.f32.gmra.mrb[0].mxu0 %v1351
        %v1428 = vpop.f32.mrb[0].mxu0
        %v1429 = vadd.f32 0.0, %v1428
        %v1430 = vpop.f32.mrb[0].mxu0
        %v1431 = vadd.f32 0.0, %v1430
        %1432 = vmatprep.mubr.f32.mxu0 0.0
        %1433 = vmatmul.mubr.f32.gmra.mrb[0].mxu0 %v1354
        %v1434 = vpop.f32.mrb[0].mxu0
        %v1435 = vadd.f32 0.0, %v1434
        %v1436 = vpop.f32.mrb[0].mxu0
        %v1437 = vadd.f32 0.0, %v1436
        %1438 = vmatprep.mubr.f32.mxu0 0.0
        %1439 = vmatmul.mubr.f32.gmra.mrb[0].mxu0 %v1357
        %v1440 = vpop.f32.mrb[0].mxu0
        %v1441 = vadd.f32 0.0, %v1440
        %v1442 = vpop.f32.mrb[0].mxu0
        %v1443 = vadd.f32 0.0, %v1442
        %1444 = vmatprep.mubr.f32.mxu0 0.0
        %1445 = vmatmul.mubr.f32.gmra.mrb[0].mxu0 %v1360
        %v1446 = vpop.f32.mrb[0].mxu0
        %v1447 = vadd.f32 0.0, %v1446
        %v1448 = vpop.f32.mrb[0].mxu0
        %v1449 = vadd.f32 0.0, %v1448
        %1450 = vdwg.mxu0
        %1451 = vst [vmem:[#allocation3 + $0x40] sm:$0xff] %v1429
        %1452 = vst [vmem:[#allocation3 + $0x48] sm:$0xff] %v1431
        %1453 = vst [vmem:[#allocation3 + $0x50] sm:$0xff] %v1435
        %1454 = vst [vmem:[#allocation3 + $0x58] sm:$0xff] %v1437
        %1455 = vst [vmem:[#allocation3 + $0x60] sm:$0xff] %v1441
        %1456 = vst [vmem:[#allocation3 + $0x68] sm:$0xff] %v1443
        %1457 = vst [vmem:[#allocation3 + $0x70] sm:$0xff] %v1447
        %1458 = vst [vmem:[#allocation3 + $0x78] sm:$0xff] %v1449
        %v1459 = vld [vmem:[#allocation2 + $0x80] sm:$0xff]
        %v1460 = vld [vmem:[#allocation2 + $0x88] sm:$0xff]
        %v1461 = vld [vmem:[#allocation2 + $0x90] sm:$0xff]
        %v1462 = vld [vmem:[#allocation2 + $0x98] sm:$0xff]
        %v1463 = vld [vmem:[#allocation2 + $0xa0] sm:$0xff]
        %v1464 = vld [vmem:[#allocation2 + $0xa8] sm:$0xff]
        %v1465 = vld [vmem:[#allocation2 + $0xb0] sm:$0xff]
        %v1466 = vld [vmem:[#allocation2 + $0xb8] sm:$0xff]
        %v1467 = vld [vmem:[#allocation2 + $0x180] sm:$0xff]
        %v1468 = vld [vmem:[#allocation2 + $0x188] sm:$0xff]
        %v1469 = vld [vmem:[#allocation2 + $0x190] sm:$0xff]
        %v1470 = vld [vmem:[#allocation2 + $0x198] sm:$0xff]
        %v1471 = vld [vmem:[#allocation2 + $0x1a0] sm:$0xff]
        %v1472 = vld [vmem:[#allocation2 + $0x1a8] sm:$0xff]
        %v1473 = vld [vmem:[#allocation2 + $0x1b0] sm:$0xff]
        %v1474 = vld [vmem:[#allocation2 + $0x1b8] sm:$0xff]
        %v1475 = vld [vmem:[#allocation2 + $0x280] sm:$0xff]
        %v1476 = vld [vmem:[#allocation2 + $0x288] sm:$0xff]
        %v1477 = vld [vmem:[#allocation2 + $0x290] sm:$0xff]
        %v1478 = vld [vmem:[#allocation2 + $0x298] sm:$0xff]
        %v1479 = vld [vmem:[#allocation2 + $0x2a0] sm:$0xff]
        %v1480 = vld [vmem:[#allocation2 + $0x2a8] sm:$0xff]
        %v1481 = vld [vmem:[#allocation2 + $0x2b0] sm:$0xff]
        %v1482 = vld [vmem:[#allocation2 + $0x2b8] sm:$0xff]
        %v1483 = vmax.f32 %v1467, %v1468
        %1484 = vmax.xlane.f32.xlu0 %v1483
        %v1485 = vpop.xlane.xlu0 %1484
        %v1486 = vmax.f32 %v1469, %v1470
        %1487 = vmax.xlane.f32.xlu0 %v1486
        %v1488 = vpop.xlane.xlu0 %1487
        %v1489 = vmax.f32 %v1471, %v1472
        %1490 = vmax.xlane.f32.xlu0 %v1489
        %v1491 = vpop.xlane.xlu0 %1490
        %v1492 = vmax.f32 %v1473, %v1474
        %1493 = vmax.xlane.f32.xlu0 %v1492
        %v1494 = vpop.xlane.xlu0 %1493
        %v1495 = vsub.f32 %v1467, %v1485
        %v1496 = vsub.f32 %v1468, %v1485
        %v1497 = vsub.f32 %v1469, %v1488
        %v1498 = vsub.f32 %v1470, %v1488
        %v1499 = vsub.f32 %v1471, %v1491
        %v1500 = vsub.f32 %v1472, %v1491
        %v1501 = vsub.f32 %v1473, %v1494
        %v1502 = vsub.f32 %v1474, %v1494
        %v1503 = vmul.f32 %v1495, 1.442695
        %v1504 = vpow.pop %v1503
        %v1505 = vmul.f32 %v1496, 1.442695
        %v1506 = vpow.pop %v1505
        %v1507 = vmul.f32 %v1497, 1.442695
        %v1508 = vpow.pop %v1507
        %v1509 = vmul.f32 %v1498, 1.442695
        %v1510 = vpow.pop %v1509
        %v1511 = vmul.f32 %v1499, 1.442695
        %v1512 = vpow.pop %v1511
        %v1513 = vmul.f32 %v1500, 1.442695
        %v1514 = vpow.pop %v1513
        %v1515 = vmul.f32 %v1501, 1.442695
        %v1516 = vpow.pop %v1515
        %v1517 = vmul.f32 %v1502, 1.442695
        %v1518 = vpow.pop %v1517
        %v1519 = vadd.f32 %v1504, %v1506
        %1520 = vadd.xlane.f32.xlu0 %v1519
        %v1521 = vpop.xlane.xlu0 %1520
        %v1522 = vadd.f32 %v1508, %v1510
        %1523 = vadd.xlane.f32.xlu0 %v1522
        %v1524 = vpop.xlane.xlu0 %1523
        %v1525 = vadd.f32 %v1512, %v1514
        %1526 = vadd.xlane.f32.xlu0 %v1525
        %v1527 = vpop.xlane.xlu0 %1526
        %v1528 = vadd.f32 %v1516, %v1518
        %1529 = vadd.xlane.f32.xlu0 %v1528
        %v1530 = vpop.xlane.xlu0 %1529
        %v1531 = vrcp.pop %v1521
        %v1532 = vrcp.pop %v1524
        %v1533 = vrcp.pop %v1527
        %v1534 = vrcp.pop %v1530
        %1535 = vmatprep.subr.mxu0 %v1476
        %1536 = vmatpush1.xpose.msra.mxu0 %v1475
        %1537 = vmatprep.subr.mxu0 %v1478
        %1538 = vmatpush1.xpose.msra.mxu0 %v1477
        %1539 = vmatprep.subr.mxu0 %v1480
        %1540 = vmatpush1.xpose.msra.mxu0 %v1479
        %1541 = vmatprep.subr.mxu0 %v1482
        %1542 = vmatpush1.xpose.msra.mxu0 %v1481
        %1543 = vmatprep.subr.mxu0 0.0
        %1544 = vmatpush1.xpose.msra.mxu0 0.0
        %1545 = vmatprep.subr.mxu0 0.0
        %1546 = vmatpush1.xpose.msra.mxu0 0.0
        %1547 = vmatprep.subr.mxu0 0.0
        %1548 = vmatpush1.xpose.msra.mxu0 0.0
        %1549 = vmatprep.subr.mxu0 0.0
        %1550 = vmatpush1.xpose.msra.mxu0 0.0
        %1551 = vmatprep.subr.mxu0 0.0
        %1552 = vmatpush1.xpose.msra.mxu0 0.0
        %1553 = vmatprep.subr.mxu0 0.0
        %1554 = vmatpush1.xpose.msra.mxu0 0.0
        %1555 = vmatprep.subr.mxu0 0.0
        %1556 = vmatpush1.xpose.msra.mxu0 0.0
        %1557 = vmatprep.subr.mxu0 0.0
        %1558 = vmatpush1.xpose.msra.mxu0 0.0
        %1559 = vmatprep.subr.mxu0 0.0
        %1560 = vmatpush1.xpose.msra.mxu0 0.0
        %1561 = vmatprep.subr.mxu0 0.0
        %1562 = vmatpush1.xpose.msra.mxu0 0.0
        %1563 = vmatprep.subr.mxu0 0.0
        %1564 = vmatpush1.xpose.msra.mxu0 0.0
        %1565 = vmatprep.subr.mxu0 0.0
        %1566 = vmatpush1.xpose.msra.mxu0 0.0
        %1567 = vmatprep.subr.mxu0 0.0
        %1568 = vmatpush1.xpose.msra.mxu0 0.0
        %1569 = vmatprep.subr.mxu0 0.0
        %1570 = vmatpush1.xpose.msra.mxu0 0.0
        %1571 = vmatprep.subr.mxu0 0.0
        %1572 = vmatpush1.xpose.msra.mxu0 0.0
        %1573 = vmatprep.subr.mxu0 0.0
        %1574 = vmatpush1.xpose.msra.mxu0 0.0
        %1575 = vmatprep.subr.mxu0 0.0
        %1576 = vmatpush1.xpose.msra.mxu0 0.0
        %1577 = vmatprep.subr.mxu0 0.0
        %1578 = vmatpush1.xpose.msra.mxu0 0.0
        %1579 = vmatprep.subr.mxu0 0.0
        %1580 = vmatpush1.xpose.msra.mxu0 0.0
        %1581 = vmatprep.subr.mxu0 0.0
        %1582 = vmatpush1.xpose.msra.mxu0 0.0
        %1583 = vmatprep.subr.mxu0 0.0
        %1584 = vmatpush1.xpose.msra.mxu0 0.0
        %1585 = vmatprep.subr.mxu0 0.0
        %1586 = vmatpush1.xpose.msra.mxu0 0.0
        %1587 = vmatprep.subr.mxu0 0.0
        %1588 = vmatpush1.xpose.msra.mxu0 0.0
        %1589 = vmatprep.subr.mxu0 0.0
        %1590 = vmatpush1.xpose.msra.mxu0 0.0
        %1591 = vmatprep.subr.mxu0 0.0
        %1592 = vmatpush1.xpose.msra.mxu0 0.0
        %1593 = vmatprep.subr.mxu0 0.0
        %1594 = vmatpush1.xpose.msra.mxu0 0.0
        %1595 = vmatprep.subr.mxu0 0.0
        %1596 = vmatpush1.xpose.msra.mxu0 0.0
        %1597 = vmatprep.subr.mxu0 0.0
        %1598 = vmatpush1.xpose.msra.mxu0 0.0
        %1599 = vmatprep.mubr.f32.mxu0 %v1506
        %1600 = vmatmul.mubr.f32.gmra.mrb[0].mxu0 %v1504
        %v1601 = vpop.f32.mrb[0].mxu0
        %v1602 = vadd.f32 0.0, %v1601
        %v1603 = vpop.f32.mrb[0].mxu0
        %1604 = vmatprep.mubr.f32.mxu0 %v1510
        %1605 = vmatmul.mubr.f32.gmra.mrb[0].mxu0 %v1508
        %v1606 = vpop.f32.mrb[0].mxu0
        %v1607 = vadd.f32 0.0, %v1606
        %v1608 = vpop.f32.mrb[0].mxu0
        %1609 = vmatprep.mubr.f32.mxu0 %v1514
        %1610 = vmatmul.mubr.f32.gmra.mrb[0].mxu0 %v1512
        %v1611 = vpop.f32.mrb[0].mxu0
        %v1612 = vadd.f32 0.0, %v1611
        %v1613 = vpop.f32.mrb[0].mxu0
        %1614 = vmatprep.mubr.f32.mxu0 %v1518
        %1615 = vmatmul.mubr.f32.gmra.mrb[0].mxu0 %v1516
        %v1616 = vpop.f32.mrb[0].mxu0
        %v1617 = vadd.f32 0.0, %v1616
        %v1618 = vpop.f32.mrb[0].mxu0
        %1619 = vdwg.mxu0
        %v1620 = vmul.f32 %v1602, %v1531
        %v1621 = vmul.f32 %v1607, %v1532
        %v1622 = vmul.f32 %v1612, %v1533
        %v1623 = vmul.f32 %v1617, %v1534
        %1624 = vxpose.xlu0.b32.start [1/16] %v1620, 128
        %1625 = vxpose.xlu0.b32.cont [2/16] %v1621, 128
        %1626 = vxpose.xlu0.b32.cont [3/16] %v1622, 128
        %1627 = vxpose.xlu0.b32.cont [4/16] %v1623, 128
        %1628 = vxpose.xlu0.b32.cont [5/16] 0.0, 128
        %1629 = vxpose.xlu0.b32.cont [6/16] 0.0, 128
        %1630 = vxpose.xlu0.b32.cont [7/16] 0.0, 128
        %1631 = vxpose.xlu0.b32.cont [8/16] 0.0, 128
        %1632 = vxpose.xlu0.b32.cont [9/16] 0.0, 128
        %1633 = vxpose.xlu0.b32.cont [10/16] 0.0, 128
        %1634 = vxpose.xlu0.b32.cont [11/16] 0.0, 128
        %1635 = vxpose.xlu0.b32.cont [12/16] 0.0, 128
        %1636 = vxpose.xlu0.b32.cont [13/16] 0.0, 128
        %1637 = vxpose.xlu0.b32.cont [14/16] 0.0, 128
        %1638 = vxpose.xlu0.b32.cont [15/16] 0.0, 128
        %1639 = vxpose.xlu0.b32.end [16/16] 0.0, 128
        %v1640 = vpop.trf.xlu0
        %v1641 = vpop.trf.xlu0
        %v1642 = vpop.trf.xlu0
        %v1643 = vpop.trf.xlu0
        %v1644 = vpop.trf.xlu0
        %v1645 = vpop.trf.xlu0
        %v1646 = vpop.trf.xlu0
        %v1647 = vpop.trf.xlu0
        %v1648 = vpop.trf.xlu0
        %v1649 = vpop.trf.xlu0
        %v1650 = vpop.trf.xlu0
        %v1651 = vpop.trf.xlu0
        %v1652 = vpop.trf.xlu0
        %v1653 = vpop.trf.xlu0
        %v1654 = vpop.trf.xlu0
        %v1655 = vpop.trf.xlu0
        %v1657 = vsel %vm1043, %v1640, 0
        %v1660 = vsel %vm1043, %v1641, 0
        %v1663 = vsel %vm1043, %v1642, 0
        %v1666 = vsel %vm1043, %v1643, 0
        %1668 = vmatprep.subr.mxu0 %v1460
        %1669 = vmatpush1.msra.mxu0 %v1459
        %1670 = vmatprep.subr.mxu0 %v1462
        %1671 = vmatpush1.msra.mxu0 %v1461
        %1672 = vmatprep.subr.mxu0 %v1464
        %1673 = vmatpush1.msra.mxu0 %v1463
        %1674 = vmatprep.subr.mxu0 %v1466
        %1675 = vmatpush1.msra.mxu0 %v1465
        %1676 = vmatprep.subr.mxu0 0.0
        %1677 = vmatpush1.msra.mxu0 0.0
        %1678 = vmatprep.subr.mxu0 0.0
        %1679 = vmatpush1.msra.mxu0 0.0
        %1680 = vmatprep.subr.mxu0 0.0
        %1681 = vmatpush1.msra.mxu0 0.0
        %1682 = vmatprep.subr.mxu0 0.0
        %1683 = vmatpush1.msra.mxu0 0.0
        %1684 = vmatprep.subr.mxu0 0.0
        %1685 = vmatpush1.msra.mxu0 0.0
        %1686 = vmatprep.subr.mxu0 0.0
        %1687 = vmatpush1.msra.mxu0 0.0
        %1688 = vmatprep.subr.mxu0 0.0
        %1689 = vmatpush1.msra.mxu0 0.0
        %1690 = vmatprep.subr.mxu0 0.0
        %1691 = vmatpush1.msra.mxu0 0.0
        %1692 = vmatprep.subr.mxu0 0.0
        %1693 = vmatpush1.msra.mxu0 0.0
        %1694 = vmatprep.subr.mxu0 0.0
        %1695 = vmatpush1.msra.mxu0 0.0
        %1696 = vmatprep.subr.mxu0 0.0
        %1697 = vmatpush1.msra.mxu0 0.0
        %1698 = vmatprep.subr.mxu0 0.0
        %1699 = vmatpush1.msra.mxu0 0.0
        %1700 = vmatprep.subr.mxu0 0.0
        %1701 = vmatpush1.msra.mxu0 0.0
        %1702 = vmatprep.subr.mxu0 0.0
        %1703 = vmatpush1.msra.mxu0 0.0
        %1704 = vmatprep.subr.mxu0 0.0
        %1705 = vmatpush1.msra.mxu0 0.0
        %1706 = vmatprep.subr.mxu0 0.0
        %1707 = vmatpush1.msra.mxu0 0.0
        %1708 = vmatprep.subr.mxu0 0.0
        %1709 = vmatpush1.msra.mxu0 0.0
        %1710 = vmatprep.subr.mxu0 0.0
        %1711 = vmatpush1.msra.mxu0 0.0
        %1712 = vmatprep.subr.mxu0 0.0
        %1713 = vmatpush1.msra.mxu0 0.0
        %1714 = vmatprep.subr.mxu0 0.0
        %1715 = vmatpush1.msra.mxu0 0.0
        %1716 = vmatprep.subr.mxu0 0.0
        %1717 = vmatpush1.msra.mxu0 0.0
        %1718 = vmatprep.subr.mxu0 0.0
        %1719 = vmatpush1.msra.mxu0 0.0
        %1720 = vmatprep.subr.mxu0 0.0
        %1721 = vmatpush1.msra.mxu0 0.0
        %1722 = vmatprep.subr.mxu0 0.0
        %1723 = vmatpush1.msra.mxu0 0.0
        %1724 = vmatprep.subr.mxu0 0.0
        %1725 = vmatpush1.msra.mxu0 0.0
        %1726 = vmatprep.subr.mxu0 0.0
        %1727 = vmatpush1.msra.mxu0 0.0
        %1728 = vmatprep.subr.mxu0 0.0
        %1729 = vmatpush1.msra.mxu0 0.0
        %1730 = vmatprep.subr.mxu0 0.0
        %1731 = vmatpush1.msra.mxu0 0.0
        %1732 = vmatprep.mubr.f32.mxu0 0.0
        %1733 = vmatmul.mubr.f32.gmra.mrb[0].mxu0 %v1657
        %v1734 = vpop.f32.mrb[0].mxu0
        %v1735 = vadd.f32 0.0, %v1734
        %v1736 = vpop.f32.mrb[0].mxu0
        %v1737 = vadd.f32 0.0, %v1736
        %1738 = vmatprep.mubr.f32.mxu0 0.0
        %1739 = vmatmul.mubr.f32.gmra.mrb[0].mxu0 %v1660
        %v1740 = vpop.f32.mrb[0].mxu0
        %v1741 = vadd.f32 0.0, %v1740
        %v1742 = vpop.f32.mrb[0].mxu0
        %v1743 = vadd.f32 0.0, %v1742
        %1744 = vmatprep.mubr.f32.mxu0 0.0
        %1745 = vmatmul.mubr.f32.gmra.mrb[0].mxu0 %v1663
        %v1746 = vpop.f32.mrb[0].mxu0
        %v1747 = vadd.f32 0.0, %v1746
        %v1748 = vpop.f32.mrb[0].mxu0
        %v1749 = vadd.f32 0.0, %v1748
        %1750 = vmatprep.mubr.f32.mxu0 0.0
        %1751 = vmatmul.mubr.f32.gmra.mrb[0].mxu0 %v1666
        %v1752 = vpop.f32.mrb[0].mxu0
        %v1753 = vadd.f32 0.0, %v1752
        %v1754 = vpop.f32.mrb[0].mxu0
        %v1755 = vadd.f32 0.0, %v1754
        %1756 = vdwg.mxu0
        %1757 = vst [vmem:[#allocation3 + $0x80] sm:$0xff] %v1735
        %1758 = vst [vmem:[#allocation3 + $0x88] sm:$0xff] %v1737
        %1759 = vst [vmem:[#allocation3 + $0x90] sm:$0xff] %v1741
        %1760 = vst [vmem:[#allocation3 + $0x98] sm:$0xff] %v1743
        %1761 = vst [vmem:[#allocation3 + $0xa0] sm:$0xff] %v1747
        %1762 = vst [vmem:[#allocation3 + $0xa8] sm:$0xff] %v1749
        %1763 = vst [vmem:[#allocation3 + $0xb0] sm:$0xff] %v1753
        %1764 = vst [vmem:[#allocation3 + $0xb8] sm:$0xff] %v1755
        %v1765 = vld [vmem:[#allocation2 + $0xc0] sm:$0xff]
        %v1766 = vld [vmem:[#allocation2 + $0xc8] sm:$0xff]
        %v1767 = vld [vmem:[#allocation2 + $0xd0] sm:$0xff]
        %v1768 = vld [vmem:[#allocation2 + $0xd8] sm:$0xff]
        %v1769 = vld [vmem:[#allocation2 + $0xe0] sm:$0xff]
        %v1770 = vld [vmem:[#allocation2 + $0xe8] sm:$0xff]
        %v1771 = vld [vmem:[#allocation2 + $0xf0] sm:$0xff]
        %v1772 = vld [vmem:[#allocation2 + $0xf8] sm:$0xff]
        %v1773 = vld [vmem:[#allocation2 + $0x1c0] sm:$0xff]
        %v1774 = vld [vmem:[#allocation2 + $0x1c8] sm:$0xff]
        %v1775 = vld [vmem:[#allocation2 + $0x1d0] sm:$0xff]
        %v1776 = vld [vmem:[#allocation2 + $0x1d8] sm:$0xff]
        %v1777 = vld [vmem:[#allocation2 + $0x1e0] sm:$0xff]
        %v1778 = vld [vmem:[#allocation2 + $0x1e8] sm:$0xff]
        %v1779 = vld [vmem:[#allocation2 + $0x1f0] sm:$0xff]
        %v1780 = vld [vmem:[#allocation2 + $0x1f8] sm:$0xff]
        %v1781 = vld [vmem:[#allocation2 + $0x2c0] sm:$0xff]
        %v1782 = vld [vmem:[#allocation2 + $0x2c8] sm:$0xff]
        %v1783 = vld [vmem:[#allocation2 + $0x2d0] sm:$0xff]
        %v1784 = vld [vmem:[#allocation2 + $0x2d8] sm:$0xff]
        %v1785 = vld [vmem:[#allocation2 + $0x2e0] sm:$0xff]
        %v1786 = vld [vmem:[#allocation2 + $0x2e8] sm:$0xff]
        %v1787 = vld [vmem:[#allocation2 + $0x2f0] sm:$0xff]
        %v1788 = vld [vmem:[#allocation2 + $0x2f8] sm:$0xff]
        %v1789 = vmax.f32 %v1773, %v1774
        %1790 = vmax.xlane.f32.xlu0 %v1789
        %v1791 = vpop.xlane.xlu0 %1790
        %v1792 = vmax.f32 %v1775, %v1776
        %1793 = vmax.xlane.f32.xlu0 %v1792
        %v1794 = vpop.xlane.xlu0 %1793
        %v1795 = vmax.f32 %v1777, %v1778
        %1796 = vmax.xlane.f32.xlu0 %v1795
        %v1797 = vpop.xlane.xlu0 %1796
        %v1798 = vmax.f32 %v1779, %v1780
        %1799 = vmax.xlane.f32.xlu0 %v1798
        %v1800 = vpop.xlane.xlu0 %1799
        %v1801 = vsub.f32 %v1773, %v1791
        %v1802 = vsub.f32 %v1774, %v1791
        %v1803 = vsub.f32 %v1775, %v1794
        %v1804 = vsub.f32 %v1776, %v1794
        %v1805 = vsub.f32 %v1777, %v1797
        %v1806 = vsub.f32 %v1778, %v1797
        %v1807 = vsub.f32 %v1779, %v1800
        %v1808 = vsub.f32 %v1780, %v1800
        %v1809 = vmul.f32 %v1801, 1.442695
        %v1810 = vpow.pop %v1809
        %v1811 = vmul.f32 %v1802, 1.442695
        %v1812 = vpow.pop %v1811
        %v1813 = vmul.f32 %v1803, 1.442695
        %v1814 = vpow.pop %v1813
        %v1815 = vmul.f32 %v1804, 1.442695
        %v1816 = vpow.pop %v1815
        %v1817 = vmul.f32 %v1805, 1.442695
        %v1818 = vpow.pop %v1817
        %v1819 = vmul.f32 %v1806, 1.442695
        %v1820 = vpow.pop %v1819
        %v1821 = vmul.f32 %v1807, 1.442695
        %v1822 = vpow.pop %v1821
        %v1823 = vmul.f32 %v1808, 1.442695
        %v1824 = vpow.pop %v1823
        %v1825 = vadd.f32 %v1810, %v1812
        %1826 = vadd.xlane.f32.xlu0 %v1825
        %v1827 = vpop.xlane.xlu0 %1826
        %v1828 = vadd.f32 %v1814, %v1816
        %1829 = vadd.xlane.f32.xlu0 %v1828
        %v1830 = vpop.xlane.xlu0 %1829
        %v1831 = vadd.f32 %v1818, %v1820
        %1832 = vadd.xlane.f32.xlu0 %v1831
        %v1833 = vpop.xlane.xlu0 %1832
        %v1834 = vadd.f32 %v1822, %v1824
        %1835 = vadd.xlane.f32.xlu0 %v1834
        %v1836 = vpop.xlane.xlu0 %1835
        %v1837 = vrcp.pop %v1827
        %v1838 = vrcp.pop %v1830
        %v1839 = vrcp.pop %v1833
        %v1840 = vrcp.pop %v1836
        %1841 = vmatprep.subr.mxu0 %v1782
        %1842 = vmatpush1.xpose.msra.mxu0 %v1781
        %1843 = vmatprep.subr.mxu0 %v1784
        %1844 = vmatpush1.xpose.msra.mxu0 %v1783
        %1845 = vmatprep.subr.mxu0 %v1786
        %1846 = vmatpush1.xpose.msra.mxu0 %v1785
        %1847 = vmatprep.subr.mxu0 %v1788
        %1848 = vmatpush1.xpose.msra.mxu0 %v1787
        %1849 = vmatprep.subr.mxu0 0.0
        %1850 = vmatpush1.xpose.msra.mxu0 0.0
        %1851 = vmatprep.subr.mxu0 0.0
        %1852 = vmatpush1.xpose.msra.mxu0 0.0
        %1853 = vmatprep.subr.mxu0 0.0
        %1854 = vmatpush1.xpose.msra.mxu0 0.0
        %1855 = vmatprep.subr.mxu0 0.0
        %1856 = vmatpush1.xpose.msra.mxu0 0.0
        %1857 = vmatprep.subr.mxu0 0.0
        %1858 = vmatpush1.xpose.msra.mxu0 0.0
        %1859 = vmatprep.subr.mxu0 0.0
        %1860 = vmatpush1.xpose.msra.mxu0 0.0
        %1861 = vmatprep.subr.mxu0 0.0
        %1862 = vmatpush1.xpose.msra.mxu0 0.0
        %1863 = vmatprep.subr.mxu0 0.0
        %1864 = vmatpush1.xpose.msra.mxu0 0.0
        %1865 = vmatprep.subr.mxu0 0.0
        %1866 = vmatpush1.xpose.msra.mxu0 0.0
        %1867 = vmatprep.subr.mxu0 0.0
        %1868 = vmatpush1.xpose.msra.mxu0 0.0
        %1869 = vmatprep.subr.mxu0 0.0
        %1870 = vmatpush1.xpose.msra.mxu0 0.0
        %1871 = vmatprep.subr.mxu0 0.0
        %1872 = vmatpush1.xpose.msra.mxu0 0.0
        %1873 = vmatprep.subr.mxu0 0.0
        %1874 = vmatpush1.xpose.msra.mxu0 0.0
        %1875 = vmatprep.subr.mxu0 0.0
        %1876 = vmatpush1.xpose.msra.mxu0 0.0
        %1877 = vmatprep.subr.mxu0 0.0
        %1878 = vmatpush1.xpose.msra.mxu0 0.0
        %1879 = vmatprep.subr.mxu0 0.0
        %1880 = vmatpush1.xpose.msra.mxu0 0.0
        %1881 = vmatprep.subr.mxu0 0.0
        %1882 = vmatpush1.xpose.msra.mxu0 0.0
        %1883 = vmatprep.subr.mxu0 0.0
        %1884 = vmatpush1.xpose.msra.mxu0 0.0
        %1885 = vmatprep.subr.mxu0 0.0
        %1886 = vmatpush1.xpose.msra.mxu0 0.0
        %1887 = vmatprep.subr.mxu0 0.0
        %1888 = vmatpush1.xpose.msra.mxu0 0.0
        %1889 = vmatprep.subr.mxu0 0.0
        %1890 = vmatpush1.xpose.msra.mxu0 0.0
        %1891 = vmatprep.subr.mxu0 0.0
        %1892 = vmatpush1.xpose.msra.mxu0 0.0
        %1893 = vmatprep.subr.mxu0 0.0
        %1894 = vmatpush1.xpose.msra.mxu0 0.0
        %1895 = vmatprep.subr.mxu0 0.0
        %1896 = vmatpush1.xpose.msra.mxu0 0.0
        %1897 = vmatprep.subr.mxu0 0.0
        %1898 = vmatpush1.xpose.msra.mxu0 0.0
        %1899 = vmatprep.subr.mxu0 0.0
        %1900 = vmatpush1.xpose.msra.mxu0 0.0
        %1901 = vmatprep.subr.mxu0 0.0
        %1902 = vmatpush1.xpose.msra.mxu0 0.0
        %1903 = vmatprep.subr.mxu0 0.0
        %1904 = vmatpush1.xpose.msra.mxu0 0.0
        %1905 = vmatprep.mubr.f32.mxu0 %v1812
        %1906 = vmatmul.mubr.f32.gmra.mrb[0].mxu0 %v1810
        %v1907 = vpop.f32.mrb[0].mxu0
        %v1908 = vadd.f32 0.0, %v1907
        %v1909 = vpop.f32.mrb[0].mxu0
        %1910 = vmatprep.mubr.f32.mxu0 %v1816
        %1911 = vmatmul.mubr.f32.gmra.mrb[0].mxu0 %v1814
        %v1912 = vpop.f32.mrb[0].mxu0
        %v1913 = vadd.f32 0.0, %v1912
        %v1914 = vpop.f32.mrb[0].mxu0
        %1915 = vmatprep.mubr.f32.mxu0 %v1820
        %1916 = vmatmul.mubr.f32.gmra.mrb[0].mxu0 %v1818
        %v1917 = vpop.f32.mrb[0].mxu0
        %v1918 = vadd.f32 0.0, %v1917
        %v1919 = vpop.f32.mrb[0].mxu0
        %1920 = vmatprep.mubr.f32.mxu0 %v1824
        %1921 = vmatmul.mubr.f32.gmra.mrb[0].mxu0 %v1822
        %v1922 = vpop.f32.mrb[0].mxu0
        %v1923 = vadd.f32 0.0, %v1922
        %v1924 = vpop.f32.mrb[0].mxu0
        %1925 = vdwg.mxu0
        %v1926 = vmul.f32 %v1908, %v1837
        %v1927 = vmul.f32 %v1913, %v1838
        %v1928 = vmul.f32 %v1918, %v1839
        %v1929 = vmul.f32 %v1923, %v1840
        %1930 = vxpose.xlu0.b32.start [1/16] %v1926, 128
        %1931 = vxpose.xlu0.b32.cont [2/16] %v1927, 128
        %1932 = vxpose.xlu0.b32.cont [3/16] %v1928, 128
        %1933 = vxpose.xlu0.b32.cont [4/16] %v1929, 128
        %1934 = vxpose.xlu0.b32.cont [5/16] 0.0, 128
        %1935 = vxpose.xlu0.b32.cont [6/16] 0.0, 128
        %1936 = vxpose.xlu0.b32.cont [7/16] 0.0, 128
        %1937 = vxpose.xlu0.b32.cont [8/16] 0.0, 128
        %1938 = vxpose.xlu0.b32.cont [9/16] 0.0, 128
        %1939 = vxpose.xlu0.b32.cont [10/16] 0.0, 128
        %1940 = vxpose.xlu0.b32.cont [11/16] 0.0, 128
        %1941 = vxpose.xlu0.b32.cont [12/16] 0.0, 128
        %1942 = vxpose.xlu0.b32.cont [13/16] 0.0, 128
        %1943 = vxpose.xlu0.b32.cont [14/16] 0.0, 128
        %1944 = vxpose.xlu0.b32.cont [15/16] 0.0, 128
        %1945 = vxpose.xlu0.b32.end [16/16] 0.0, 128
        %v1946 = vpop.trf.xlu0
        %v1947 = vpop.trf.xlu0
        %v1948 = vpop.trf.xlu0
        %v1949 = vpop.trf.xlu0
        %v1950 = vpop.trf.xlu0
        %v1951 = vpop.trf.xlu0
        %v1952 = vpop.trf.xlu0
        %v1953 = vpop.trf.xlu0
        %v1954 = vpop.trf.xlu0
        %v1955 = vpop.trf.xlu0
        %v1956 = vpop.trf.xlu0
        %v1957 = vpop.trf.xlu0
        %v1958 = vpop.trf.xlu0
        %v1959 = vpop.trf.xlu0
        %v1960 = vpop.trf.xlu0
        %v1961 = vpop.trf.xlu0
        %v1963 = vsel %vm1043, %v1946, 0
        %v1966 = vsel %vm1043, %v1947, 0
        %v1969 = vsel %vm1043, %v1948, 0
        %v1972 = vsel %vm1043, %v1949, 0
        %1974 = vmatprep.subr.mxu0 %v1766
        %1975 = vmatpush1.msra.mxu0 %v1765
        %1976 = vmatprep.subr.mxu0 %v1768
        %1977 = vmatpush1.msra.mxu0 %v1767
        %1978 = vmatprep.subr.mxu0 %v1770
        %1979 = vmatpush1.msra.mxu0 %v1769
        %1980 = vmatprep.subr.mxu0 %v1772
        %1981 = vmatpush1.msra.mxu0 %v1771
        %1982 = vmatprep.subr.mxu0 0.0
        %1983 = vmatpush1.msra.mxu0 0.0
        %1984 = vmatprep.subr.mxu0 0.0
        %1985 = vmatpush1.msra.mxu0 0.0
        %1986 = vmatprep.subr.mxu0 0.0
        %1987 = vmatpush1.msra.mxu0 0.0
        %1988 = vmatprep.subr.mxu0 0.0
        %1989 = vmatpush1.msra.mxu0 0.0
        %1990 = vmatprep.subr.mxu0 0.0
        %1991 = vmatpush1.msra.mxu0 0.0
        %1992 = vmatprep.subr.mxu0 0.0
        %1993 = vmatpush1.msra.mxu0 0.0
        %1994 = vmatprep.subr.mxu0 0.0
        %1995 = vmatpush1.msra.mxu0 0.0
        %1996 = vmatprep.subr.mxu0 0.0
        %1997 = vmatpush1.msra.mxu0 0.0
        %1998 = vmatprep.subr.mxu0 0.0
        %1999 = vmatpush1.msra.mxu0 0.0
        %2000 = vmatprep.subr.mxu0 0.0
        %2001 = vmatpush1.msra.mxu0 0.0
        %2002 = vmatprep.subr.mxu0 0.0
        %2003 = vmatpush1.msra.mxu0 0.0
        %2004 = vmatprep.subr.mxu0 0.0
        %2005 = vmatpush1.msra.mxu0 0.0
        %2006 = vmatprep.subr.mxu0 0.0
        %2007 = vmatpush1.msra.mxu0 0.0
        %2008 = vmatprep.subr.mxu0 0.0
        %2009 = vmatpush1.msra.mxu0 0.0
        %2010 = vmatprep.subr.mxu0 0.0
        %2011 = vmatpush1.msra.mxu0 0.0
        %2012 = vmatprep.subr.mxu0 0.0
        %2013 = vmatpush1.msra.mxu0 0.0
        %2014 = vmatprep.subr.mxu0 0.0
        %2015 = vmatpush1.msra.mxu0 0.0
        %2016 = vmatprep.subr.mxu0 0.0
        %2017 = vmatpush1.msra.mxu0 0.0
        %2018 = vmatprep.subr.mxu0 0.0
        %2019 = vmatpush1.msra.mxu0 0.0
        %2020 = vmatprep.subr.mxu0 0.0
        %2021 = vmatpush1.msra.mxu0 0.0
        %2022 = vmatprep.subr.mxu0 0.0
        %2023 = vmatpush1.msra.mxu0 0.0
        %2024 = vmatprep.subr.mxu0 0.0
        %2025 = vmatpush1.msra.mxu0 0.0
        %2026 = vmatprep.subr.mxu0 0.0
        %2027 = vmatpush1.msra.mxu0 0.0
        %2028 = vmatprep.subr.mxu0 0.0
        %2029 = vmatpush1.msra.mxu0 0.0
        %2030 = vmatprep.subr.mxu0 0.0
        %2031 = vmatpush1.msra.mxu0 0.0
        %2032 = vmatprep.subr.mxu0 0.0
        %2033 = vmatpush1.msra.mxu0 0.0
        %2034 = vmatprep.subr.mxu0 0.0
        %2035 = vmatpush1.msra.mxu0 0.0
        %2036 = vmatprep.subr.mxu0 0.0
        %2037 = vmatpush1.msra.mxu0 0.0
        %2038 = vmatprep.mubr.f32.mxu0 0.0
        %2039 = vmatmul.mubr.f32.gmra.mrb[0].mxu0 %v1963
        %v2040 = vpop.f32.mrb[0].mxu0
        %v2041 = vadd.f32 0.0, %v2040
        %v2042 = vpop.f32.mrb[0].mxu0
        %v2043 = vadd.f32 0.0, %v2042
        %2044 = vmatprep.mubr.f32.mxu0 0.0
        %2045 = vmatmul.mubr.f32.gmra.mrb[0].mxu0 %v1966
        %v2046 = vpop.f32.mrb[0].mxu0
        %v2047 = vadd.f32 0.0, %v2046
        %v2048 = vpop.f32.mrb[0].mxu0
        %v2049 = vadd.f32 0.0, %v2048
        %2050 = vmatprep.mubr.f32.mxu0 0.0
        %2051 = vmatmul.mubr.f32.gmra.mrb[0].mxu0 %v1969
        %v2052 = vpop.f32.mrb[0].mxu0
        %v2053 = vadd.f32 0.0, %v2052
        %v2054 = vpop.f32.mrb[0].mxu0
        %v2055 = vadd.f32 0.0, %v2054
        %2056 = vmatprep.mubr.f32.mxu0 0.0
        %2057 = vmatmul.mubr.f32.gmra.mrb[0].mxu0 %v1972
        %v2058 = vpop.f32.mrb[0].mxu0
        %v2059 = vadd.f32 0.0, %v2058
        %v2060 = vpop.f32.mrb[0].mxu0
        %v2061 = vadd.f32 0.0, %v2060
        %2062 = vdwg.mxu0
        %2063 = vst [vmem:[#allocation3 + $0xc0] sm:$0xff] %v2041
        %2064 = vst [vmem:[#allocation3 + $0xc8] sm:$0xff] %v2043
        %2065 = vst [vmem:[#allocation3 + $0xd0] sm:$0xff] %v2047
        %2066 = vst [vmem:[#allocation3 + $0xd8] sm:$0xff] %v2049
        %2067 = vst [vmem:[#allocation3 + $0xe0] sm:$0xff] %v2053
        %2068 = vst [vmem:[#allocation3 + $0xe8] sm:$0xff] %v2055
        %2069 = vst [vmem:[#allocation3 + $0xf0] sm:$0xff] %v2059
        %2070 = vst [vmem:[#allocation3 + $0xf8] sm:$0xff] %v2061
        %v2071 = vld [vmem:[%s2] sm:$0xf]
        %v2072 = vld [vmem:[#allocation3] sm:$0xff]
        %v2073 = vld [vmem:[#allocation3 + $0x8] sm:$0xff]
        %v2074 = vld [vmem:[#allocation3 + $0x10] sm:$0xff]
        %v2075 = vld [vmem:[#allocation3 + $0x18] sm:$0xff]
        %v2076 = vld [vmem:[#allocation3 + $0x20] sm:$0xff]
        %v2077 = vld [vmem:[#allocation3 + $0x28] sm:$0xff]
        %v2078 = vld [vmem:[#allocation3 + $0x30] sm:$0xff]
        %v2079 = vld [vmem:[#allocation3 + $0x38] sm:$0xff]
        %v2080 = vld [vmem:[#allocation3 + $0x40] sm:$0xff]
        %v2081 = vld [vmem:[#allocation3 + $0x48] sm:$0xff]
        %v2082 = vld [vmem:[#allocation3 + $0x50] sm:$0xff]
        %v2083 = vld [vmem:[#allocation3 + $0x58] sm:$0xff]
        %v2084 = vld [vmem:[#allocation3 + $0x60] sm:$0xff]
        %v2085 = vld [vmem:[#allocation3 + $0x68] sm:$0xff]
        %v2086 = vld [vmem:[#allocation3 + $0x70] sm:$0xff]
        %v2087 = vld [vmem:[#allocation3 + $0x78] sm:$0xff]
        %v2088 = vld [vmem:[#allocation3 + $0x80] sm:$0xff]
        %v2089 = vld [vmem:[#allocation3 + $0x88] sm:$0xff]
        %v2090 = vld [vmem:[#allocation3 + $0x90] sm:$0xff]
        %v2091 = vld [vmem:[#allocation3 + $0x98] sm:$0xff]
        %v2092 = vld [vmem:[#allocation3 + $0xa0] sm:$0xff]
        %v2093 = vld [vmem:[#allocation3 + $0xa8] sm:$0xff]
        %v2094 = vld [vmem:[#allocation3 + $0xb0] sm:$0xff]
        %v2095 = vld [vmem:[#allocation3 + $0xb8] sm:$0xff]
        %v2096 = vld [vmem:[#allocation3 + $0xc0] sm:$0xff]
        %v2097 = vld [vmem:[#allocation3 + $0xc8] sm:$0xff]
        %v2098 = vld [vmem:[#allocation3 + $0xd0] sm:$0xff]
        %v2099 = vld [vmem:[#allocation3 + $0xd8] sm:$0xff]
        %v2100 = vld [vmem:[#allocation3 + $0xe0] sm:$0xff]
        %v2101 = vld [vmem:[#allocation3 + $0xe8] sm:$0xff]
        %v2102 = vld [vmem:[#allocation3 + $0xf0] sm:$0xff]
        %v2103 = vld [vmem:[#allocation3 + $0xf8] sm:$0xff]
        %v2104 = vld [vmem:[%s3] sm:$0xf]
        %2106 = vset.pattern.permute.xlu0 0
        %2107 = vperm.xlu0 %2106, %v2104
        %v2108 = vpop.permute.xlu0 %2107
        %2110 = vmatprep.subr.mxu0 %v2073
        %2111 = vmatpush1.msra.mxu0 %v2072
        %2112 = vmatprep.subr.mxu0 %v2075
        %2113 = vmatpush1.msra.mxu0 %v2074
        %2114 = vmatprep.subr.mxu0 %v2077
        %2115 = vmatpush1.msra.mxu0 %v2076
        %2116 = vmatprep.subr.mxu0 %v2079
        %2117 = vmatpush1.msra.mxu0 %v2078
        %2118 = vmatprep.subr.mxu0 %v2081
        %2119 = vmatpush1.msra.mxu0 %v2080
        %2120 = vmatprep.subr.mxu0 %v2083
        %2121 = vmatpush1.msra.mxu0 %v2082
        %2122 = vmatprep.subr.mxu0 %v2085
        %2123 = vmatpush1.msra.mxu0 %v2084
        %2124 = vmatprep.subr.mxu0 %v2087
        %2125 = vmatpush1.msra.mxu0 %v2086
        %2126 = vmatprep.subr.mxu0 %v2089
        %2127 = vmatpush1.msra.mxu0 %v2088
        %2128 = vmatprep.subr.mxu0 %v2091
        %2129 = vmatpush1.msra.mxu0 %v2090
        %2130 = vmatprep.subr.mxu0 %v2093
        %2131 = vmatpush1.msra.mxu0 %v2092
        %2132 = vmatprep.subr.mxu0 %v2095
        %2133 = vmatpush1.msra.mxu0 %v2094
        %2134 = vmatprep.subr.mxu0 %v2097
        %2135 = vmatpush1.msra.mxu0 %v2096
        %2136 = vmatprep.subr.mxu0 %v2099
        %2137 = vmatpush1.msra.mxu0 %v2098
        %2138 = vmatprep.subr.mxu0 %v2101
        %2139 = vmatpush1.msra.mxu0 %v2100
        %2140 = vmatprep.subr.mxu0 %v2103
        %2141 = vmatpush1.msra.mxu0 %v2102
        %2142 = vmatprep.subr.mxu0 0.0
        %2143 = vmatpush1.msra.mxu0 0.0
        %2144 = vmatprep.subr.mxu0 0.0
        %2145 = vmatpush1.msra.mxu0 0.0
        %2146 = vmatprep.subr.mxu0 0.0
        %2147 = vmatpush1.msra.mxu0 0.0
        %2148 = vmatprep.subr.mxu0 0.0
        %2149 = vmatpush1.msra.mxu0 0.0
        %2150 = vmatprep.subr.mxu0 0.0
        %2151 = vmatpush1.msra.mxu0 0.0
        %2152 = vmatprep.subr.mxu0 0.0
        %2153 = vmatpush1.msra.mxu0 0.0
        %2154 = vmatprep.subr.mxu0 0.0
        %2155 = vmatpush1.msra.mxu0 0.0
        %2156 = vmatprep.subr.mxu0 0.0
        %2157 = vmatpush1.msra.mxu0 0.0
        %2158 = vmatprep.subr.mxu0 0.0
        %2159 = vmatpush1.msra.mxu0 0.0
        %2160 = vmatprep.subr.mxu0 0.0
        %2161 = vmatpush1.msra.mxu0 0.0
        %2162 = vmatprep.subr.mxu0 0.0
        %2163 = vmatpush1.msra.mxu0 0.0
        %2164 = vmatprep.subr.mxu0 0.0
        %2165 = vmatpush1.msra.mxu0 0.0
        %2166 = vmatprep.subr.mxu0 0.0
        %2167 = vmatpush1.msra.mxu0 0.0
        %2168 = vmatprep.subr.mxu0 0.0
        %2169 = vmatpush1.msra.mxu0 0.0
        %2170 = vmatprep.subr.mxu0 0.0
        %2171 = vmatpush1.msra.mxu0 0.0
        %2172 = vmatprep.subr.mxu0 0.0
        %2173 = vmatpush1.msra.mxu0 0.0
        %2174 = vmatprep.mubr.f32.mxu0 0.0
        %2175 = vmatmul.mubr.f32.gmra.mrb[0].mxu0 %v2071
        %v2176 = vpop.f32.mrb[0].mxu0
        %v2177 = vadd.f32 %v2108, %v2176
        %v2178 = vpop.f32.mrb[0].mxu0
        %v2179 = vadd.f32 %v2108, %v2178
        %2180 = vdwg.mxu0
        %v2183 = vcombine.low %v2177, %v2179
        %2185 = vst [vmem:[%s190] sm:$0xff] %v2183
        %s2186 = sand.u32 %s115, 1
        %s2187 = scalar_lea.sflag [#allocation5], %s2186
        %s2188 = sand.u32 %s115, 1
        %s2189 = smul.addr %s2188, 8
        %s2190 = scalar_lea.vmem [#allocation4], %s2189
        // Predicated region
        $region37: #{tpu_custom_call.1} parent=35 // pred_check
          %p2191 = pneg %p125
        $region38: #{tpu_custom_call.1} parent=35 // pred_check_branch
          %2193 = sbr.rel (%p2191) target = $region40
        $region39: #{tpu_custom_call.1} parent=35 // pred_region
          %s2195 = ssub.s32 128, 128
          %2196 = vsyncadd %s2187, %s2195
          %s2197 = smul.addr %s18, 2
          %s2198 = smul.addr %s2197, 64
          %s2199 = scalar_lea.hbm %s4, %s2198
          %s2201 = sshll.u32 %s2190, 4
          %s2202 = int_to_ptr.vmem [resolvable:$true] %s2201
          %2204 = dma.vmem_to_hbm [thread:$0]  %s2202, 128, %s2199, %s2187
        $region40: #{tpu_custom_call.1} parent=35 // pred_fallthru
          _
      $region36: #{tpu_custom_call.1} parent=5 // pred_fallthru
        _
      %p2205 = scmp.le.s32.totalorder 2, %s13
      // Predicated region
      $region41: #{tpu_custom_call.1} parent=5 // pred_check
        %p2206 = pneg %p2205
      $region42: #{tpu_custom_call.1} parent=5 // pred_check_branch
        %2208 = sbr.rel (%p2206) target = $region44
      $region43: #{tpu_custom_call.1} parent=5 // pred_region
        %s2209 = ssub.s32 %s13, 2
        // Predicated region
        $region45: #{tpu_custom_call.1} parent=43 // pred_check
          %p2210 = pneg %p131
        $region46: #{tpu_custom_call.1} parent=43 // pred_check_branch
          %2212 = sbr.rel (%p2210) target = $region48
        $region47: #{tpu_custom_call.1} parent=43 // pred_region
          %s2213 = sand.u32 %s116, 1
          %s2214 = scalar_lea.sflag [#allocation5], %s2213
          %s2215 = sand.u32 %s116, 1
          %s2216 = smul.addr %s2215, 8
          %s2217 = scalar_lea.vmem [#allocation4], %s2216
          %2218 = dma.done %s2214, 128
        $region48: #{tpu_custom_call.1} parent=43 // pred_fallthru
          _
      $region44: #{tpu_custom_call.1} parent=5 // pred_fallthru
        _
    $region6: #{tpu_custom_call.1} parent=1 // loop_footer
      %s17 = sadd.s32 1, %s13
    $region7: #{tpu_custom_call.1} parent=1 // loop_footer_branch
      %12 = sbr.rel target = $region3
    $region8: #{tpu_custom_call.1} parent=1 // loop_exit
      _
    %2219 = vsyncpa [#allocation5], 1
    %s2220 = scalar_lea.sflag [#allocation5], 1
    %2221 = vsyncpa %s2220, 1

</llo_original>
